<compile_context>
chip_gen: v7x
topology: tpu7x:2x2x1
jax: 0.10.0
libtpu: 0.0.40
codegen_flags: <defaults>
</compile_context>

<pallas_src>
import functools

import jax
import jax.numpy as jnp
from jax.experimental import pallas as pl
from jax.experimental.pallas import tpu as pltpu


def _round_up(x, m):
    return (x + m - 1) // m * m


def _k_tiling(f_in):
    """(padded f_in, contraction tile) -- static Python ints."""
    if f_in <= 512:
        return f_in, f_in                      # single small K slab, no padding needed
    for tk in (512, 256, 128):
        if f_in % tk == 0:
            return f_in, tk
    f_in_p = _round_up(f_in, 128)              # zero-padding the contraction is exact
    for tk in (512, 256, 128):
        if f_in_p % tk == 0:
            return f_in_p, tk
    return f_in_p, 128


def _vmem_budget(tb, tk, hidden_p, f_out_p, x_isz, w_isz):
    return (
        2 * tb * tk * x_isz                    # x tile (double-buffered)
        + 2 * tk * hidden_p * w_isz            # W1 K-slab (double-buffered)
        + 2 * hidden_p * 4                     # b1
        + 2 * hidden_p * f_out_p * w_isz       # W2 (constant index; budget 2 bufs)
        + 2 * f_out_p * 4                      # b2
        + 2 * tb * f_out_p * 4                 # out tile
        + tb * hidden_p * 4                    # h_acc scratch (f32)
        + tb * hidden_p * (4 + w_isz)          # epilogue temporaries (f32 read + cast)
    )


def _mlp_kernel(x_ref, w1_ref, b1_ref, w2_ref, b2_ref, o_ref, h_acc):
    # x_ref:  (TB, TK)        batch-tile x input-feature K-slab
    # w1_ref: (TK, Hp)        fc weight K-slab (pre-transposed, hidden padded)
    # b1_ref: (1, Hp)   f32
    # w2_ref: (Hp, Fo_p)      regression weight (pre-transposed, padded)
    # b2_ref: (1, Fo_p) f32
    # o_ref:  (TB, Fo_p) f32
    # h_acc:  (TB, Hp)  f32   hidden activation, never leaves VMEM
    k = pl.program_id(1)

    x = x_ref[...].astype(w1_ref.dtype)
    contrib = jnp.dot(x, w1_ref[...], preferred_element_type=jnp.float32)

    @pl.when(k == 0)
    def _():
        h_acc[...] = contrib + b1_ref[...]     # bias folded into init (cheaper epilogue)

    @pl.when(k > 0)
    def _():
        h_acc[...] += contrib

    @pl.when(k == pl.num_programs(1) - 1)
    def _():
        y = jnp.dot(h_acc[...].astype(w2_ref.dtype), w2_ref[...],
                    preferred_element_type=jnp.float32) + b2_ref[...]
        o_ref[...] = y.astype(o_ref.dtype)


def prepare_params(w1, b1, w2, b2, compute_dtype=jnp.bfloat16):
    """One-time parameter prep: zero-pad + cast. Do NOT call per forward step.

    w1: (f_in, hidden)  b1: (hidden,)  w2: (hidden, f_out)  b2: (f_out,)
    (weights stored pre-transposed w.r.t. PyTorch nn.Linear)."""
    f_in, hidden = w1.shape
    f_out = w2.shape[1]
    assert b1.shape == (hidden,) and w2.shape[0] == hidden and b2.shape == (f_out,)

    f_in_p, _ = _k_tiling(f_in)
    hidden_p = _round_up(hidden, 128)          # 3000 -> 3072: clean MXU cadence
    f_out_p = _round_up(f_out, 128)            # lane-dense output stores
    w_dt = jnp.dtype(compute_dtype)

    w1_p = jnp.pad(w1, ((0, f_in_p - f_in), (0, hidden_p - hidden))).astype(w_dt)
    b1_p = jnp.pad(b1, (0, hidden_p - hidden)).reshape(1, hidden_p).astype(jnp.float32)
    w2_p = jnp.pad(w2, ((0, hidden_p - hidden), (0, f_out_p - f_out))).astype(w_dt)
    b2_p = jnp.pad(b2, (0, f_out_p - f_out)).reshape(1, f_out_p).astype(jnp.float32)
    return w1_p, b1_p, w2_p, b2_p


@functools.partial(jax.jit, static_argnames=("f_out", "block_b"))
def mlp_forward(x, w1_p, b1_p, w2_p, b2_p, *, f_out, block_b=None):
    """Fused MLP forward on pre-prepared (padded/cast) params. Returns (B, f_out) f32."""
    B, f_in = x.shape
    f_in_p, hidden_p = w1_p.shape
    f_out_p = w2_p.shape[1]

    # ---- contraction tiling (static) ----------------------------------------
    if f_in_p <= 512:
        tk = f_in_p
    elif f_in_p % 512 == 0:
        tk = 512
    elif f_in_p % 256 == 0:
        tk = 256
    else:
        tk = 128
    grid_k = f_in_p // tk

    # Zero-pad x columns only if the params were padded along f_in (exact math).
    if f_in != f_in_p:
        x = jnp.pad(x, ((0, 0), (0, f_in_p - f_in)))

    # ---- batch tiling, sized against this generation's VMEM -----------------
    x_isz = jnp.dtype(x.dtype).itemsize
    w_isz = jnp.dtype(w1_p.dtype).itemsize
    sub = 16 if w_isz < 4 else 8               # bf16 packs 16 rows per vreg

    try:
        vmem_cap = int(pltpu.get_tpu_info().vmem_capacity_bytes)
    except Exception:                          # pragma: no cover - conservative fallback
        vmem_cap = 64 << 20

    if block_b is None:
        # Bigger batch tiles on 128 MiB parts (v5e/v6e) keep the W1 HBM stream
        # compute-bound; 64 MiB parts (v7x) get a smaller default.
        block_b = 768 if vmem_cap >= (100 << 20) else 512

    tb = max(sub, min(block_b, _round_up(B, sub)))
    headroom = 16 << 20
    while tb > sub and _vmem_budget(tb, tk, hidden_p, f_out_p, x_isz, w_isz) + headroom > vmem_cap:
        tb = max(sub, _round_up((tb + 1) // 2, sub))
    grid_b = pl.cdiv(B, tb)

    budget = _vmem_budget(tb, tk, hidden_p, f_out_p, x_isz, w_isz)
    vmem_limit = int(max(min(budget + headroom, vmem_cap - (4 << 20)), 32 << 20))

    cost = pl.CostEstimate(
        flops=2 * B * hidden_p * (f_in_p + f_out_p),
        transcendentals=0,
        bytes_accessed=(x.size * x_isz
                        + grid_b * w1_p.size * w_isz   # W1 re-streamed once per batch tile
                        + w2_p.size * w_isz
                        + b1_p.size * 4 + b2_p.size * 4
                        + B * f_out_p * 4),
    )

    out = pl.pallas_call(
        _mlp_kernel,
        out_shape=jax.ShapeDtypeStruct((B, f_out_p), jnp.float32),
        grid_spec=pltpu.PrefetchScalarGridSpec(
            num_scalar_prefetch=0,
            grid=(grid_b, grid_k),
            in_specs=[
                pl.BlockSpec((tb, tk), lambda i, k: (i, k)),             # x tile
                pl.BlockSpec((tk, hidden_p), lambda i, k: (k, 0)),       # W1 K-slab
                pl.BlockSpec((1, hidden_p), lambda i, k: (0, 0)),        # b1 (resident)
                pl.BlockSpec((hidden_p, f_out_p), lambda i, k: (0, 0)),  # W2 (resident)
                pl.BlockSpec((1, f_out_p), lambda i, k: (0, 0)),         # b2 (resident)
            ],
            out_specs=pl.BlockSpec((tb, f_out_p), lambda i, k: (i, 0)),
            scratch_shapes=[pltpu.VMEM((tb, hidden_p), jnp.float32)],
        ),
        compiler_params=pltpu.CompilerParams(
            dimension_semantics=("parallel", "arbitrary"),
            vmem_limit_bytes=vmem_limit,
        ),
        cost_estimate=cost,
    )(x, w1_p, b1_p, w2_p, b2_p)

    if f_out_p != f_out:
        out = out[:, :f_out]
    return out


def init_params(key, input_features, output_features, hidden=3000):
    """PyTorch nn.Linear-style init (uniform +/- 1/sqrt(fan_in)); weights stored
    pre-transposed as (in_features, out_features)."""
    k1, k2, k3, k4 = jax.random.split(key, 4)
    s1 = 1.0 / jnp.sqrt(jnp.float32(input_features))
    s2 = 1.0 / jnp.sqrt(jnp.float32(hidden))
    w1 = jax.random.uniform(k1, (input_features, hidden), jnp.float32, -s1, s1)
    b1 = jax.random.uniform(k2, (hidden,), jnp.float32, -s1, s1)
    w2 = jax.random.uniform(k3, (hidden, output_features), jnp.float32, -s2, s2)
    b2 = jax.random.uniform(k4, (output_features,), jnp.float32, -s2, s2)
    return w1, b1, w2, b2


if __name__ == "__main__":
    key = jax.random.PRNGKey(0)
    input_features = 32
    output_features = 16
    batch = 8

    k_x, k_p = jax.random.split(key)
    x = jax.random.normal(k_x, (batch, input_features), jnp.float32)
    w1, b1, w2, b2 = init_params(k_p, input_features, output_features)

    # Pure-JAX f32 reference of the same math.
    y_ref = (x @ w1 + b1) @ w2 + b2

    # One-time parameter prep (pad + cast), reused across every forward call.
    params_bf16 = prepare_params(w1, b1, w2, b2, compute_dtype=jnp.bfloat16)
    y = mlp_forward(x, *params_bf16, f_out=output_features)
    jax.block_until_ready(y)
    assert y.shape == (batch, output_features)
    assert jnp.allclose(y, y_ref, atol=2e-2, rtol=2e-2), float(jnp.max(jnp.abs(y - y_ref)))

    # Full-f32 path: tight tolerance (structural sanity check on the fused kernel).
    params_f32 = prepare_params(w1, b1, w2, b2, compute_dtype=jnp.float32)
    y32 = mlp_forward(x, *params_f32, f_out=output_features)
    jax.block_until_ready(y32)
    assert jnp.allclose(y32, y_ref, atol=1e-3, rtol=1e-3), float(jnp.max(jnp.abs(y32 - y_ref)))

    print("KERNEL_OK")
</pallas_src>

<mosaic_0001>
module attributes {stable_mosaic.version = 11 : i64} {
  func.func @_mlp_kernel(%arg0: i32, %arg1: i32, %arg2: memref<16x32xf32, #tpu.memory_space<vmem>>, %arg3: memref<32x3072xbf16, #tpu.memory_space<vmem>>, %arg4: memref<1x3072xf32, #tpu.memory_space<vmem>>, %arg5: memref<3072x128xbf16, #tpu.memory_space<vmem>>, %arg6: memref<1x128xf32, #tpu.memory_space<vmem>>, %arg7: memref<16x128xf32, #tpu.memory_space<vmem>>, %arg8: memref<16x3072xf32, #tpu.memory_space<vmem>>) attributes {dimension_semantics = [#tpu.dimension_semantics<parallel>, #tpu.dimension_semantics<arbitrary>], iteration_bounds = array<i64: 1, 1>, scalar_prefetch = 0 : i64, scratch_operands = 1 : i64, tpu.core_type = #tpu.core_type<tc>, window_params = [{transform_indices = @transform_0, window_bounds = array<i64: 16, 32>}, {transform_indices = @transform_1, window_bounds = array<i64: 32, 3072>}, {pipeline_mode = #tpu.pipeline_mode<synchronous>, transform_indices = @transform_2, window_bounds = array<i64: 1, 3072>}, {pipeline_mode = #tpu.pipeline_mode<synchronous>, transform_indices = @transform_3, window_bounds = array<i64: 3072, 128>}, {pipeline_mode = #tpu.pipeline_mode<synchronous>, transform_indices = @transform_4, window_bounds = array<i64: 1, 128>}, {transform_indices = @transform_5, window_bounds = array<i64: 16, 128>}]} {
    %c0 = arith.constant 0 : index
    %c0_0 = arith.constant 0 : index
    %0 = vector.load %arg2[%c0, %c0_0] : memref<16x32xf32, #tpu.memory_space<vmem>>, vector<16x32xf32>
    %1 = arith.truncf %0 : vector<16x32xf32> to vector<16x32xbf16>
    %c0_1 = arith.constant 0 : index
    %c0_2 = arith.constant 0 : index
    %2 = vector.load %arg3[%c0_1, %c0_2] : memref<32x3072xbf16, #tpu.memory_space<vmem>>, vector<32x3072xbf16>
    %cst = arith.constant dense<0.000000e+00> : vector<16x3072xf32>
    %3 = tpu.matmul %1, %2, %cst {dimension_numbers = #tpu.dot_dimension_numbers<[1], [0], [0], [1], [0, 0, 1, 1], [], []>} : vector<16x32xbf16>, vector<32x3072xbf16>, vector<16x3072xf32> -> vector<16x3072xf32>
    %c0_i32 = arith.constant 0 : i32
    %4 = arith.cmpi eq, %arg1, %c0_i32 : i32
    %5 = arith.extui %4 : i1 to i32
    %c0_i32_3 = arith.constant 0 : i32
    %6 = arith.cmpi ne, %5, %c0_i32_3 : i32
    scf.if %6 {
      %c0_8 = arith.constant 0 : index
      %c0_9 = arith.constant 0 : index
      %13 = vector.load %arg4[%c0_8, %c0_9] : memref<1x3072xf32, #tpu.memory_space<vmem>>, vector<1x3072xf32>
      %14 = vector.broadcast %13 : vector<1x3072xf32> to vector<16x3072xf32>
      %15 = arith.addf %3, %14 : vector<16x3072xf32>
      %c0_10 = arith.constant 0 : index
      %c0_11 = arith.constant 0 : index
      %16 = vector.load %arg8[%c0_10, %c0_11] : memref<16x3072xf32, #tpu.memory_space<vmem>>, vector<16x3072xf32>
      tpu.vector_store %arg8[%c0_10, %c0_11], %15 {strides = array<i32>} : memref<16x3072xf32, #tpu.memory_space<vmem>>, vector<16x3072xf32>,
    } else {
    }
    %c0_i32_4 = arith.constant 0 : i32
    %7 = arith.cmpi sgt, %arg1, %c0_i32_4 : i32
    %8 = arith.extui %7 : i1 to i32
    %c0_i32_5 = arith.constant 0 : i32
    %9 = arith.cmpi ne, %8, %c0_i32_5 : i32
    scf.if %9 {
      %c0_8 = arith.constant 0 : index
      %c0_9 = arith.constant 0 : index
      %13 = vector.load %arg8[%c0_8, %c0_9] : memref<16x3072xf32, #tpu.memory_space<vmem>>, vector<16x3072xf32>
      %14 = arith.addf %13, %3 : vector<16x3072xf32>
      %c0_10 = arith.constant 0 : index
      %c0_11 = arith.constant 0 : index
      %15 = vector.load %arg8[%c0_10, %c0_11] : memref<16x3072xf32, #tpu.memory_space<vmem>>, vector<16x3072xf32>
      tpu.vector_store %arg8[%c0_10, %c0_11], %14 {strides = array<i32>} : memref<16x3072xf32, #tpu.memory_space<vmem>>, vector<16x3072xf32>,
    } else {
    }
    %c0_i32_6 = arith.constant 0 : i32
    %10 = arith.cmpi eq, %arg1, %c0_i32_6 : i32
    %11 = arith.extui %10 : i1 to i32
    %c0_i32_7 = arith.constant 0 : i32
    %12 = arith.cmpi ne, %11, %c0_i32_7 : i32
    scf.if %12 {
      %c0_8 = arith.constant 0 : index
      %c0_9 = arith.constant 0 : index
      %13 = vector.load %arg8[%c0_8, %c0_9] : memref<16x3072xf32, #tpu.memory_space<vmem>>, vector<16x3072xf32>
      %14 = arith.truncf %13 : vector<16x3072xf32> to vector<16x3072xbf16>
      %c0_10 = arith.constant 0 : index
      %c0_11 = arith.constant 0 : index
      %15 = vector.load %arg5[%c0_10, %c0_11] : memref<3072x128xbf16, #tpu.memory_space<vmem>>, vector<3072x128xbf16>
      %cst_12 = arith.constant dense<0.000000e+00> : vector<16x128xf32>
      %16 = tpu.matmul %14, %15, %cst_12 {dimension_numbers = #tpu.dot_dimension_numbers<[1], [0], [0], [1], [0, 0, 1, 1], [], []>} : vector<16x3072xbf16>, vector<3072x128xbf16>, vector<16x128xf32> -> vector<16x128xf32>
      %c0_13 = arith.constant 0 : index
      %c0_14 = arith.constant 0 : index
      %17 = vector.load %arg6[%c0_13, %c0_14] : memref<1x128xf32, #tpu.memory_space<vmem>>, vector<1x128xf32>
      %18 = vector.broadcast %17 : vector<1x128xf32> to vector<16x128xf32>
      %19 = arith.addf %16, %18 : vector<16x128xf32>
      %c0_15 = arith.constant 0 : index
      %c0_16 = arith.constant 0 : index
      %20 = vector.load %arg7[%c0_15, %c0_16] : memref<16x128xf32, #tpu.memory_space<vmem>>, vector<16x128xf32>
      tpu.vector_store %arg7[%c0_15, %c0_16], %19 {strides = array<i32>} : memref<16x128xf32, #tpu.memory_space<vmem>>, vector<16x128xf32>,
    } else {
    }
    return
  }
  func.func @transform_0(%arg0: i32, %arg1: i32) -> (i32, i32) {
    %c0_i32 = arith.constant 0 : i32
    return %arg0, %arg1 : i32, i32
  }
  func.func @transform_1(%arg0: i32, %arg1: i32) -> (i32, i32) {
    %c0_i32 = arith.constant 0 : i32
    %c0_i32_0 = arith.constant 0 : i32
    return %arg1, %c0_i32 : i32, i32
  }
  func.func @transform_2(%arg0: i32, %arg1: i32) -> (i32, i32) {
    %c0_i32 = arith.constant 0 : i32
    %c0_i32_0 = arith.constant 0 : i32
    %c0_i32_1 = arith.constant 0 : i32
    return %c0_i32, %c0_i32_0 : i32, i32
  }
  func.func @transform_3(%arg0: i32, %arg1: i32) -> (i32, i32) {
    %c0_i32 = arith.constant 0 : i32
    %c0_i32_0 = arith.constant 0 : i32
    %c0_i32_1 = arith.constant 0 : i32
    return %c0_i32, %c0_i32_0 : i32, i32
  }
  func.func @transform_4(%arg0: i32, %arg1: i32) -> (i32, i32) {
    %c0_i32 = arith.constant 0 : i32
    %c0_i32_0 = arith.constant 0 : i32
    %c0_i32_1 = arith.constant 0 : i32
    return %c0_i32, %c0_i32_0 : i32, i32
  }
  func.func @transform_5(%arg0: i32, %arg1: i32) -> (i32, i32) {
    %c0_i32 = arith.constant 0 : i32
    %c0_i32_0 = arith.constant 0 : i32
    return %arg0, %c0_i32 : i32, i32
  }
}

</mosaic_0001>

<llo_original>
// kernel: mlp_forward.1
$region0: #{mlp_forward.1}
  #allocation0 [shape = 'u32[]', space=smem, size = 0x4, offset = 0x4, fixed_abs, tag = 'smem constant byte address 0x4 - core index']
  #allocation1 [shape = 'u32[144,128]{1,0:T(1,128)}', space=vmem, size = 0x12000, scoped, tag = 'internal scratch']
  #allocation2 [shape = 'f32[16,3072]{1,0:T(8,128)}', space=vmem, size = 0x30000, scoped, tag = 'scratch operand']
  %s0 = inlined_call_operand.hbm [shape: f32[8,32], index: 0, kind: input, shape index: {}]
  %s1 = inlined_call_operand.hbm [shape: bf16[32,3072], index: 1, kind: input, shape index: {}]
  %s2 = inlined_call_operand.hbm [shape: f32[1,3072], index: 2, kind: input, shape index: {}]
  %s3 = inlined_call_operand.hbm [shape: bf16[3072,128], index: 3, kind: input, shape index: {}]
  %s4 = inlined_call_operand.vmem [shape: f32[1,128], index: 4, kind: input, shape index: {}]
  %s5 = inlined_call_operand.hbm [shape: f32[8,128], index: 5, kind: output, shape index: {}]
  %s6 = sld [smem:[#allocation0]]
  $region58: #{mlp_forward.1} parent=0
    _
  %s8 = ssub.s32 1, %s6
  %s9 = scalar_select 0, %s8, %s6
  $region1: #{mlp_forward.1} parent=0
    #allocation3 [shape = 'u8[8192]{0}', space=vmem, size = 0x2000, scoped, tag = 'input window, operand 0, single buffered']
    #allocation4 [shape = 's32[1]{0}', space=sflag, size = 0x4, scoped, tag = 'scoped memory for mlp_forward.1']
    #allocation5 [shape = 's32[1]{0}', space=sflag, size = 0x4, scoped, tag = 'scoped memory for mlp_forward.1']
    #allocation6 [shape = 'u8[196608]{0}', space=vmem, size = 0x30000, scoped, tag = 'input window, operand 1, single buffered']
    #allocation7 [shape = 's32[1]{0}', space=sflag, size = 0x4, scoped, tag = 'scoped memory for mlp_forward.1']
    #allocation8 [shape = 'u8[12288]{0}', space=vmem, size = 0x3000, scoped, tag = 'input window, operand 2, single buffered']
    #allocation9 [shape = 'u8[786432]{0}', space=vmem, size = 0xc0000, scoped, tag = 'input window, operand 3, single buffered']
    #allocation10 [shape = 's32[1]{0}', space=sflag, size = 0x4, scoped, tag = 'scoped memory for mlp_forward.1']
    #allocation11 [shape = 'u8[8192]{0}', space=vmem, size = 0x2000, scoped, tag = 'output window, operand 0, single buffered']
    %10 = vsyncpa [#allocation4], 0
    %11 = vsyncpa [#allocation7], 0
    %12 = vsyncpa [#allocation10], 0
    %13 = vsyncpa [#allocation5], 0
    // Predicated region
    $region2: #{mlp_forward.1} parent=1 // pred_check
      _
    $region3: #{mlp_forward.1} parent=1 // pred_check_branch
      %15 = sbr.rel (0) target = $region5
    $region4: #{mlp_forward.1} parent=1 // pred_region
      %s17 = ssub.s32 256, 128
      %18 = vsyncadd [#allocation4], %s17
      %s19 = sshll.u32 [#allocation3], 4
      %s20 = int_to_ptr.vmem [resolvable:$true] %s19
      %25 = dma.hbm_to_vmem [thread:$0]  %s0, 128, %s20, [#allocation4], 128, 128, 8
    $region5: #{mlp_forward.1} parent=1 // pred_fallthru
      _
    // Predicated region
    $region6: #{mlp_forward.1} parent=1 // pred_check
      _
    $region7: #{mlp_forward.1} parent=1 // pred_check_branch
      %27 = sbr.rel (0) target = $region9
    $region8: #{mlp_forward.1} parent=1 // pred_region
      %s29 = ssub.s32 6144, 6144
      %30 = vsyncadd [#allocation7], %s29
      %s31 = sshll.u32 [#allocation6], 4
      %s32 = int_to_ptr.vmem [resolvable:$true] %s31
      %37 = dma.hbm_to_vmem [thread:$0]  %s1, 6144, %s32, [#allocation7], 1536, 1536, 96
    $region9: #{mlp_forward.1} parent=1 // pred_fallthru
      _
    // Predicated region
    $region10: #{mlp_forward.1} parent=1 // pred_check
      _
    $region11: #{mlp_forward.1} parent=1 // pred_check_branch
      %39 = sbr.rel (0) target = $region13
    $region12: #{mlp_forward.1} parent=1 // pred_region
      %s41 = ssub.s32 384, 384
      %42 = vsyncadd [#allocation7], %s41
      %s44 = sshll.u32 [#allocation8], 4
      %s45 = int_to_ptr.vmem [resolvable:$true] %s44
      %47 = dma.hbm_to_vmem [thread:$0]  %s2, 384, %s45, [#allocation7]
    $region13: #{mlp_forward.1} parent=1 // pred_fallthru
      _
    // Predicated region
    $region14: #{mlp_forward.1} parent=1 // pred_check
      _
    $region15: #{mlp_forward.1} parent=1 // pred_check_branch
      %49 = sbr.rel (0) target = $region17
    $region16: #{mlp_forward.1} parent=1 // pred_region
      %s51 = ssub.s32 24576, 24576
      %52 = vsyncadd [#allocation10], %s51
      %s53 = sshll.u32 [#allocation9], 4
      %s54 = int_to_ptr.vmem [resolvable:$true] %s53
      %59 = dma.hbm_to_vmem [thread:$0]  %s3, 24576, %s54, [#allocation10], 64, 64, 4
    $region17: #{mlp_forward.1} parent=1 // pred_fallthru
      _
    // Predicated region
    $region18: #{mlp_forward.1} parent=1 // pred_check
      _
    $region19: #{mlp_forward.1} parent=1 // pred_check_branch
      %61 = sbr.rel (0) target = $region21
    $region20: #{mlp_forward.1} parent=1 // pred_region
      _
    $region21: #{mlp_forward.1} parent=1 // pred_fallthru
      _
    // Predicated region
    $region22: #{mlp_forward.1} parent=1 // pred_check
      _
    $region23: #{mlp_forward.1} parent=1 // pred_check_branch
      %63 = sbr.rel (0) target = $region25
    $region24: #{mlp_forward.1} parent=1 // pred_region
      %64 = dma.done [#allocation4], 256
    $region25: #{mlp_forward.1} parent=1 // pred_fallthru
      _
    // Predicated region
    $region26: #{mlp_forward.1} parent=1 // pred_check
      _
    $region27: #{mlp_forward.1} parent=1 // pred_check_branch
      %66 = sbr.rel (0) target = $region29
    $region28: #{mlp_forward.1} parent=1 // pred_region
      %67 = dma.done [#allocation7], 6144
    $region29: #{mlp_forward.1} parent=1 // pred_fallthru
      _
    // Predicated region
    $region30: #{mlp_forward.1} parent=1 // pred_check
      _
    $region31: #{mlp_forward.1} parent=1 // pred_check_branch
      %69 = sbr.rel (0) target = $region33
    $region32: #{mlp_forward.1} parent=1 // pred_region
      %70 = dma.done [#allocation7], 384
    $region33: #{mlp_forward.1} parent=1 // pred_fallthru
      _
    // Predicated region
    $region34: #{mlp_forward.1} parent=1 // pred_check
      _
    $region35: #{mlp_forward.1} parent=1 // pred_check_branch
      %72 = sbr.rel (0) target = $region37
    $region36: #{mlp_forward.1} parent=1 // pred_region
      %73 = dma.done [#allocation10], 24576
    $region37: #{mlp_forward.1} parent=1 // pred_fallthru
      _
    %v75 = vld [vmem:[#allocation3] sm:$0xff]
    %v76 = vld [vmem:[#allocation3 + $0x8] sm:$0xff]
    %v77 = vpack.c.bf16 %v76, %v75
    %v78 = vld [vmem:[#allocation6] sm:$0xff]
    %v79 = vld [vmem:[#allocation6 + $0x8] sm:$0xff]
    %v80 = vld [vmem:[#allocation6 + $0x10] sm:$0xff]
    %v81 = vld [vmem:[#allocation6 + $0x18] sm:$0xff]
    %v82 = vld [vmem:[#allocation6 + $0x20] sm:$0xff]
    %v83 = vld [vmem:[#allocation6 + $0x28] sm:$0xff]
    %v84 = vld [vmem:[#allocation6 + $0x30] sm:$0xff]
    %v85 = vld [vmem:[#allocation6 + $0x38] sm:$0xff]
    %v86 = vld [vmem:[#allocation6 + $0x40] sm:$0xff]
    %v87 = vld [vmem:[#allocation6 + $0x48] sm:$0xff]
    %v88 = vld [vmem:[#allocation6 + $0x50] sm:$0xff]
    %v89 = vld [vmem:[#allocation6 + $0x58] sm:$0xff]
    %v90 = vld [vmem:[#allocation6 + $0x60] sm:$0xff]
    %v91 = vld [vmem:[#allocation6 + $0x68] sm:$0xff]
    %v92 = vld [vmem:[#allocation6 + $0x70] sm:$0xff]
    %v93 = vld [vmem:[#allocation6 + $0x78] sm:$0xff]
    %v94 = vld [vmem:[#allocation6 + $0x80] sm:$0xff]
    %v95 = vld [vmem:[#allocation6 + $0x88] sm:$0xff]
    %v96 = vld [vmem:[#allocation6 + $0x90] sm:$0xff]
    %v97 = vld [vmem:[#allocation6 + $0x98] sm:$0xff]
    %v98 = vld [vmem:[#allocation6 + $0xa0] sm:$0xff]
    %v99 = vld [vmem:[#allocation6 + $0xa8] sm:$0xff]
    %v100 = vld [vmem:[#allocation6 + $0xb0] sm:$0xff]
    %v101 = vld [vmem:[#allocation6 + $0xb8] sm:$0xff]
    %v102 = vld [vmem:[#allocation6 + $0xc0] sm:$0xff]
    %v103 = vld [vmem:[#allocation6 + $0xc8] sm:$0xff]
    %v104 = vld [vmem:[#allocation6 + $0xd0] sm:$0xff]
    %v105 = vld [vmem:[#allocation6 + $0xd8] sm:$0xff]
    %v106 = vld [vmem:[#allocation6 + $0xe0] sm:$0xff]
    %v107 = vld [vmem:[#allocation6 + $0xe8] sm:$0xff]
    %v108 = vld [vmem:[#allocation6 + $0xf0] sm:$0xff]
    %v109 = vld [vmem:[#allocation6 + $0xf8] sm:$0xff]
    %v110 = vld [vmem:[#allocation6 + $0x100] sm:$0xff]
    %v111 = vld [vmem:[#allocation6 + $0x108] sm:$0xff]
    %v112 = vld [vmem:[#allocation6 + $0x110] sm:$0xff]
    %v113 = vld [vmem:[#allocation6 + $0x118] sm:$0xff]
    %v114 = vld [vmem:[#allocation6 + $0x120] sm:$0xff]
    %v115 = vld [vmem:[#allocation6 + $0x128] sm:$0xff]
    %v116 = vld [vmem:[#allocation6 + $0x130] sm:$0xff]
    %v117 = vld [vmem:[#allocation6 + $0x138] sm:$0xff]
    %v118 = vld [vmem:[#allocation6 + $0x140] sm:$0xff]
    %v119 = vld [vmem:[#allocation6 + $0x148] sm:$0xff]
    %v120 = vld [vmem:[#allocation6 + $0x150] sm:$0xff]
    %v121 = vld [vmem:[#allocation6 + $0x158] sm:$0xff]
    %v122 = vld [vmem:[#allocation6 + $0x160] sm:$0xff]
    %v123 = vld [vmem:[#allocation6 + $0x168] sm:$0xff]
    %v124 = vld [vmem:[#allocation6 + $0x170] sm:$0xff]
    %v125 = vld [vmem:[#allocation6 + $0x178] sm:$0xff]
    %v174 = vunpack.c.l.b16 %v78
    %v175 = vunpack.c.h.b16 %v78
    %v176 = vunpack.c.l.b16 %v79
    %v177 = vunpack.c.h.b16 %v79
    %v178 = vunpack.c.l.b16 %v80
    %v179 = vunpack.c.h.b16 %v80
    %v180 = vunpack.c.l.b16 %v81
    %v181 = vunpack.c.h.b16 %v81
    %v182 = vunpack.c.l.b16 %v82
    %v183 = vunpack.c.h.b16 %v82
    %v184 = vunpack.c.l.b16 %v83
    %v185 = vunpack.c.h.b16 %v83
    %v186 = vunpack.c.l.b16 %v84
    %v187 = vunpack.c.h.b16 %v84
    %v188 = vunpack.c.l.b16 %v85
    %v189 = vunpack.c.h.b16 %v85
    %v190 = vunpack.c.l.b16 %v86
    %v191 = vunpack.c.h.b16 %v86
    %v192 = vunpack.c.l.b16 %v87
    %v193 = vunpack.c.h.b16 %v87
    %v194 = vunpack.c.l.b16 %v88
    %v195 = vunpack.c.h.b16 %v88
    %v196 = vunpack.c.l.b16 %v89
    %v197 = vunpack.c.h.b16 %v89
    %v198 = vunpack.c.l.b16 %v90
    %v199 = vunpack.c.h.b16 %v90
    %v200 = vunpack.c.l.b16 %v91
    %v201 = vunpack.c.h.b16 %v91
    %v202 = vunpack.c.l.b16 %v92
    %v203 = vunpack.c.h.b16 %v92
    %v204 = vunpack.c.l.b16 %v93
    %v205 = vunpack.c.h.b16 %v93
    %v206 = vunpack.c.l.b16 %v94
    %v207 = vunpack.c.h.b16 %v94
    %v208 = vunpack.c.l.b16 %v95
    %v209 = vunpack.c.h.b16 %v95
    %v210 = vunpack.c.l.b16 %v96
    %v211 = vunpack.c.h.b16 %v96
    %v212 = vunpack.c.l.b16 %v97
    %v213 = vunpack.c.h.b16 %v97
    %v214 = vunpack.c.l.b16 %v98
    %v215 = vunpack.c.h.b16 %v98
    %v216 = vunpack.c.l.b16 %v99
    %v217 = vunpack.c.h.b16 %v99
    %v218 = vunpack.c.l.b16 %v100
    %v219 = vunpack.c.h.b16 %v100
    %v220 = vunpack.c.l.b16 %v101
    %v221 = vunpack.c.h.b16 %v101
    %v222 = vunpack.c.l.b16 %v102
    %v223 = vunpack.c.h.b16 %v102
    %v224 = vunpack.c.l.b16 %v103
    %v225 = vunpack.c.h.b16 %v103
    %v226 = vunpack.c.l.b16 %v104
    %v227 = vunpack.c.h.b16 %v104
    %v228 = vunpack.c.l.b16 %v105
    %v229 = vunpack.c.h.b16 %v105
    %v230 = vunpack.c.l.b16 %v106
    %v231 = vunpack.c.h.b16 %v106
    %v232 = vunpack.c.l.b16 %v107
    %v233 = vunpack.c.h.b16 %v107
    %v234 = vunpack.c.l.b16 %v108
    %v235 = vunpack.c.h.b16 %v108
    %v236 = vunpack.c.l.b16 %v109
    %v237 = vunpack.c.h.b16 %v109
    %v238 = vunpack.c.l.b16 %v110
    %v239 = vunpack.c.h.b16 %v110
    %v240 = vunpack.c.l.b16 %v111
    %v241 = vunpack.c.h.b16 %v111
    %v242 = vunpack.c.l.b16 %v112
    %v243 = vunpack.c.h.b16 %v112
    %v244 = vunpack.c.l.b16 %v113
    %v245 = vunpack.c.h.b16 %v113
    %v246 = vunpack.c.l.b16 %v114
    %v247 = vunpack.c.h.b16 %v114
    %v248 = vunpack.c.l.b16 %v115
    %v249 = vunpack.c.h.b16 %v115
    %v250 = vunpack.c.l.b16 %v116
    %v251 = vunpack.c.h.b16 %v116
    %v252 = vunpack.c.l.b16 %v117
    %v253 = vunpack.c.h.b16 %v117
    %v254 = vunpack.c.l.b16 %v118
    %v255 = vunpack.c.h.b16 %v118
    %v256 = vunpack.c.l.b16 %v119
    %v257 = vunpack.c.h.b16 %v119
    %v258 = vunpack.c.l.b16 %v120
    %v259 = vunpack.c.h.b16 %v120
    %v260 = vunpack.c.l.b16 %v121
    %v261 = vunpack.c.h.b16 %v121
    %v262 = vunpack.c.l.b16 %v122
    %v263 = vunpack.c.h.b16 %v122
    %v264 = vunpack.c.l.b16 %v123
    %v265 = vunpack.c.h.b16 %v123
    %v266 = vunpack.c.l.b16 %v124
    %v267 = vunpack.c.h.b16 %v124
    %v268 = vunpack.c.l.b16 %v125
    %v269 = vunpack.c.h.b16 %v125
    %v270 = vpack.c.b16 %v198, %v174
    %v271 = vpack.c.b16 %v199, %v175
    %v272 = vpack.c.b16 %v200, %v176
    %v273 = vpack.c.b16 %v201, %v177
    %v274 = vpack.c.b16 %v202, %v178
    %v275 = vpack.c.b16 %v203, %v179
    %v276 = vpack.c.b16 %v204, %v180
    %v277 = vpack.c.b16 %v205, %v181
    %v278 = vpack.c.b16 %v206, %v182
    %v279 = vpack.c.b16 %v207, %v183
    %v280 = vpack.c.b16 %v208, %v184
    %v281 = vpack.c.b16 %v209, %v185
    %v282 = vpack.c.b16 %v210, %v186
    %v283 = vpack.c.b16 %v211, %v187
    %v284 = vpack.c.b16 %v212, %v188
    %v285 = vpack.c.b16 %v213, %v189
    %v286 = vpack.c.b16 %v214, %v190
    %v287 = vpack.c.b16 %v215, %v191
    %v288 = vpack.c.b16 %v216, %v192
    %v289 = vpack.c.b16 %v217, %v193
    %v290 = vpack.c.b16 %v218, %v194
    %v291 = vpack.c.b16 %v219, %v195
    %v292 = vpack.c.b16 %v220, %v196
    %v293 = vpack.c.b16 %v221, %v197
    %v294 = vpack.c.b16 %v246, %v222
    %v295 = vpack.c.b16 %v247, %v223
    %v296 = vpack.c.b16 %v248, %v224
    %v297 = vpack.c.b16 %v249, %v225
    %v298 = vpack.c.b16 %v250, %v226
    %v299 = vpack.c.b16 %v251, %v227
    %v300 = vpack.c.b16 %v252, %v228
    %v301 = vpack.c.b16 %v253, %v229
    %v302 = vpack.c.b16 %v254, %v230
    %v303 = vpack.c.b16 %v255, %v231
    %v304 = vpack.c.b16 %v256, %v232
    %v305 = vpack.c.b16 %v257, %v233
    %v306 = vpack.c.b16 %v258, %v234
    %v307 = vpack.c.b16 %v259, %v235
    %v308 = vpack.c.b16 %v260, %v236
    %v309 = vpack.c.b16 %v261, %v237
    %v310 = vpack.c.b16 %v262, %v238
    %v311 = vpack.c.b16 %v263, %v239
    %v312 = vpack.c.b16 %v264, %v240
    %v313 = vpack.c.b16 %v265, %v241
    %v314 = vpack.c.b16 %v266, %v242
    %v315 = vpack.c.b16 %v267, %v243
    %v316 = vpack.c.b16 %v268, %v244
    %v317 = vpack.c.b16 %v269, %v245
    %vm366 = vcmask 261120
    %v368 = vsel %vm366, %v77, 0
    %370 = vmatprep.subr.bf16.mxu0 %v271
    %371 = vmatpush1.bf16.msra.mxu0 %v270
    %372 = vmatprep.subr.bf16.mxu0 %v295
    %373 = vmatpush1.bf16.msra.mxu0 %v294
    %374 = vmatprep.subr.bf16.mxu0 0
    %375 = vmatpush1.bf16.msra.mxu0 0
    %376 = vmatprep.subr.bf16.mxu0 0
    %377 = vmatpush1.bf16.msra.mxu0 0
    %378 = vmatprep.subr.bf16.mxu0 0
    %379 = vmatpush1.bf16.msra.mxu0 0
    %380 = vmatprep.subr.bf16.mxu0 0
    %381 = vmatpush1.bf16.msra.mxu0 0
    %382 = vmatprep.subr.bf16.mxu0 0
    %383 = vmatpush1.bf16.msra.mxu0 0
    %384 = vmatprep.subr.bf16.mxu0 0
    %385 = vmatpush1.bf16.msra.mxu0 0
    %386 = vmatprep.subr.bf16.mxu0 0
    %387 = vmatpush1.bf16.msra.mxu0 0
    %388 = vmatprep.subr.bf16.mxu0 0
    %389 = vmatpush1.bf16.msra.mxu0 0
    %390 = vmatprep.subr.bf16.mxu0 0
    %391 = vmatpush1.bf16.msra.mxu0 0
    %392 = vmatprep.subr.bf16.mxu0 0
    %393 = vmatpush1.bf16.msra.mxu0 0
    %394 = vmatprep.subr.bf16.mxu0 0
    %395 = vmatpush1.bf16.msra.mxu0 0
    %396 = vmatprep.subr.bf16.mxu0 0
    %397 = vmatpush1.bf16.msra.mxu0 0
    %398 = vmatprep.subr.bf16.mxu0 0
    %399 = vmatpush1.bf16.msra.mxu0 0
    %400 = vmatprep.subr.bf16.mxu0 0
    %401 = vmatpush1.bf16.msra.mxu0 0
    %402 = vmatprep.mubr.bf16.mxu0 0
    %403 = vmatmul.mubr.bf16.gmra.mrb[0].mxu0 %v368
    %v404 = vpop.f32.mrb[0].mxu0
    %v405 = vadd.f32 0.0, %v404
    %v406 = vpop.f32.mrb[0].mxu0
    %v407 = vadd.f32 0.0, %v406
    %v408 = vpop.f32.mrb[0].mxu0
    %v409 = vadd.f32 0.0, %v408
    %v410 = vpop.f32.mrb[0].mxu0
    %v411 = vadd.f32 0.0, %v410
    %412 = vdwg.mxu0
    %413 = vmatprep.subr.bf16.mxu0 %v273
    %414 = vmatpush1.bf16.msra.mxu0 %v272
    %415 = vmatprep.subr.bf16.mxu0 %v297
    %416 = vmatpush1.bf16.msra.mxu0 %v296
    %417 = vmatprep.subr.bf16.mxu0 0
    %418 = vmatpush1.bf16.msra.mxu0 0
    %419 = vmatprep.subr.bf16.mxu0 0
    %420 = vmatpush1.bf16.msra.mxu0 0
    %421 = vmatprep.subr.bf16.mxu0 0
    %422 = vmatpush1.bf16.msra.mxu0 0
    %423 = vmatprep.subr.bf16.mxu0 0
    %424 = vmatpush1.bf16.msra.mxu0 0
    %425 = vmatprep.subr.bf16.mxu0 0
    %426 = vmatpush1.bf16.msra.mxu0 0
    %427 = vmatprep.subr.bf16.mxu0 0
    %428 = vmatpush1.bf16.msra.mxu0 0
    %429 = vmatprep.subr.bf16.mxu0 0
    %430 = vmatpush1.bf16.msra.mxu0 0
    %431 = vmatprep.subr.bf16.mxu0 0
    %432 = vmatpush1.bf16.msra.mxu0 0
    %433 = vmatprep.subr.bf16.mxu0 0
    %434 = vmatpush1.bf16.msra.mxu0 0
    %435 = vmatprep.subr.bf16.mxu0 0
    %436 = vmatpush1.bf16.msra.mxu0 0
    %437 = vmatprep.subr.bf16.mxu0 0
    %438 = vmatpush1.bf16.msra.mxu0 0
    %439 = vmatprep.subr.bf16.mxu0 0
    %440 = vmatpush1.bf16.msra.mxu0 0
    %441 = vmatprep.subr.bf16.mxu0 0
    %442 = vmatpush1.bf16.msra.mxu0 0
    %443 = vmatprep.subr.bf16.mxu0 0
    %444 = vmatpush1.bf16.msra.mxu0 0
    %445 = vmatprep.mubr.bf16.mxu0 0
    %446 = vmatmul.mubr.bf16.gmra.mrb[0].mxu0 %v368
    %v447 = vpop.f32.mrb[0].mxu0
    %v448 = vadd.f32 0.0, %v447
    %v449 = vpop.f32.mrb[0].mxu0
    %v450 = vadd.f32 0.0, %v449
    %v451 = vpop.f32.mrb[0].mxu0
    %v452 = vadd.f32 0.0, %v451
    %v453 = vpop.f32.mrb[0].mxu0
    %v454 = vadd.f32 0.0, %v453
    %455 = vdwg.mxu0
    %456 = vmatprep.subr.bf16.mxu0 %v275
    %457 = vmatpush1.bf16.msra.mxu0 %v274
    %458 = vmatprep.subr.bf16.mxu0 %v299
    %459 = vmatpush1.bf16.msra.mxu0 %v298
    %460 = vmatprep.subr.bf16.mxu0 0
    %461 = vmatpush1.bf16.msra.mxu0 0
    %462 = vmatprep.subr.bf16.mxu0 0
    %463 = vmatpush1.bf16.msra.mxu0 0
    %464 = vmatprep.subr.bf16.mxu0 0
    %465 = vmatpush1.bf16.msra.mxu0 0
    %466 = vmatprep.subr.bf16.mxu0 0
    %467 = vmatpush1.bf16.msra.mxu0 0
    %468 = vmatprep.subr.bf16.mxu0 0
    %469 = vmatpush1.bf16.msra.mxu0 0
    %470 = vmatprep.subr.bf16.mxu0 0
    %471 = vmatpush1.bf16.msra.mxu0 0
    %472 = vmatprep.subr.bf16.mxu0 0
    %473 = vmatpush1.bf16.msra.mxu0 0
    %474 = vmatprep.subr.bf16.mxu0 0
    %475 = vmatpush1.bf16.msra.mxu0 0
    %476 = vmatprep.subr.bf16.mxu0 0
    %477 = vmatpush1.bf16.msra.mxu0 0
    %478 = vmatprep.subr.bf16.mxu0 0
    %479 = vmatpush1.bf16.msra.mxu0 0
    %480 = vmatprep.subr.bf16.mxu0 0
    %481 = vmatpush1.bf16.msra.mxu0 0
    %482 = vmatprep.subr.bf16.mxu0 0
    %483 = vmatpush1.bf16.msra.mxu0 0
    %484 = vmatprep.subr.bf16.mxu0 0
    %485 = vmatpush1.bf16.msra.mxu0 0
    %486 = vmatprep.subr.bf16.mxu0 0
    %487 = vmatpush1.bf16.msra.mxu0 0
    %488 = vmatprep.mubr.bf16.mxu0 0
    %489 = vmatmul.mubr.bf16.gmra.mrb[0].mxu0 %v368
    %v490 = vpop.f32.mrb[0].mxu0
    %v491 = vadd.f32 0.0, %v490
    %v492 = vpop.f32.mrb[0].mxu0
    %v493 = vadd.f32 0.0, %v492
    %v494 = vpop.f32.mrb[0].mxu0
    %v495 = vadd.f32 0.0, %v494
    %v496 = vpop.f32.mrb[0].mxu0
    %v497 = vadd.f32 0.0, %v496
    %498 = vdwg.mxu0
    %499 = vmatprep.subr.bf16.mxu0 %v277
    %500 = vmatpush1.bf16.msra.mxu0 %v276
    %501 = vmatprep.subr.bf16.mxu0 %v301
    %502 = vmatpush1.bf16.msra.mxu0 %v300
    %503 = vmatprep.subr.bf16.mxu0 0
    %504 = vmatpush1.bf16.msra.mxu0 0
    %505 = vmatprep.subr.bf16.mxu0 0
    %506 = vmatpush1.bf16.msra.mxu0 0
    %507 = vmatprep.subr.bf16.mxu0 0
    %508 = vmatpush1.bf16.msra.mxu0 0
    %509 = vmatprep.subr.bf16.mxu0 0
    %510 = vmatpush1.bf16.msra.mxu0 0
    %511 = vmatprep.subr.bf16.mxu0 0
    %512 = vmatpush1.bf16.msra.mxu0 0
    %513 = vmatprep.subr.bf16.mxu0 0
    %514 = vmatpush1.bf16.msra.mxu0 0
    %515 = vmatprep.subr.bf16.mxu0 0
    %516 = vmatpush1.bf16.msra.mxu0 0
    %517 = vmatprep.subr.bf16.mxu0 0
    %518 = vmatpush1.bf16.msra.mxu0 0
    %519 = vmatprep.subr.bf16.mxu0 0
    %520 = vmatpush1.bf16.msra.mxu0 0
    %521 = vmatprep.subr.bf16.mxu0 0
    %522 = vmatpush1.bf16.msra.mxu0 0
    %523 = vmatprep.subr.bf16.mxu0 0
    %524 = vmatpush1.bf16.msra.mxu0 0
    %525 = vmatprep.subr.bf16.mxu0 0
    %526 = vmatpush1.bf16.msra.mxu0 0
    %527 = vmatprep.subr.bf16.mxu0 0
    %528 = vmatpush1.bf16.msra.mxu0 0
    %529 = vmatprep.subr.bf16.mxu0 0
    %530 = vmatpush1.bf16.msra.mxu0 0
    %531 = vmatprep.mubr.bf16.mxu0 0
    %532 = vmatmul.mubr.bf16.gmra.mrb[0].mxu0 %v368
    %v533 = vpop.f32.mrb[0].mxu0
    %v534 = vadd.f32 0.0, %v533
    %v535 = vpop.f32.mrb[0].mxu0
    %v536 = vadd.f32 0.0, %v535
    %v537 = vpop.f32.mrb[0].mxu0
    %v538 = vadd.f32 0.0, %v537
    %v539 = vpop.f32.mrb[0].mxu0
    %v540 = vadd.f32 0.0, %v539
    %541 = vdwg.mxu0
    %542 = vmatprep.subr.bf16.mxu0 %v279
    %543 = vmatpush1.bf16.msra.mxu0 %v278
    %544 = vmatprep.subr.bf16.mxu0 %v303
    %545 = vmatpush1.bf16.msra.mxu0 %v302
    %546 = vmatprep.subr.bf16.mxu0 0
    %547 = vmatpush1.bf16.msra.mxu0 0
    %548 = vmatprep.subr.bf16.mxu0 0
    %549 = vmatpush1.bf16.msra.mxu0 0
    %550 = vmatprep.subr.bf16.mxu0 0
    %551 = vmatpush1.bf16.msra.mxu0 0
    %552 = vmatprep.subr.bf16.mxu0 0
    %553 = vmatpush1.bf16.msra.mxu0 0
    %554 = vmatprep.subr.bf16.mxu0 0
    %555 = vmatpush1.bf16.msra.mxu0 0
    %556 = vmatprep.subr.bf16.mxu0 0
    %557 = vmatpush1.bf16.msra.mxu0 0
    %558 = vmatprep.subr.bf16.mxu0 0
    %559 = vmatpush1.bf16.msra.mxu0 0
    %560 = vmatprep.subr.bf16.mxu0 0
    %561 = vmatpush1.bf16.msra.mxu0 0
    %562 = vmatprep.subr.bf16.mxu0 0
    %563 = vmatpush1.bf16.msra.mxu0 0
    %564 = vmatprep.subr.bf16.mxu0 0
    %565 = vmatpush1.bf16.msra.mxu0 0
    %566 = vmatprep.subr.bf16.mxu0 0
    %567 = vmatpush1.bf16.msra.mxu0 0
    %568 = vmatprep.subr.bf16.mxu0 0
    %569 = vmatpush1.bf16.msra.mxu0 0
    %570 = vmatprep.subr.bf16.mxu0 0
    %571 = vmatpush1.bf16.msra.mxu0 0
    %572 = vmatprep.subr.bf16.mxu0 0
    %573 = vmatpush1.bf16.msra.mxu0 0
    %574 = vmatprep.mubr.bf16.mxu0 0
    %575 = vmatmul.mubr.bf16.gmra.mrb[0].mxu0 %v368
    %v576 = vpop.f32.mrb[0].mxu0
    %v577 = vadd.f32 0.0, %v576
    %v578 = vpop.f32.mrb[0].mxu0
    %v579 = vadd.f32 0.0, %v578
    %v580 = vpop.f32.mrb[0].mxu0
    %v581 = vadd.f32 0.0, %v580
    %v582 = vpop.f32.mrb[0].mxu0
    %v583 = vadd.f32 0.0, %v582
    %584 = vdwg.mxu0
    %585 = vmatprep.subr.bf16.mxu0 %v281
    %586 = vmatpush1.bf16.msra.mxu0 %v280
    %587 = vmatprep.subr.bf16.mxu0 %v305
    %588 = vmatpush1.bf16.msra.mxu0 %v304
    %589 = vmatprep.subr.bf16.mxu0 0
    %590 = vmatpush1.bf16.msra.mxu0 0
    %591 = vmatprep.subr.bf16.mxu0 0
    %592 = vmatpush1.bf16.msra.mxu0 0
    %593 = vmatprep.subr.bf16.mxu0 0
    %594 = vmatpush1.bf16.msra.mxu0 0
    %595 = vmatprep.subr.bf16.mxu0 0
    %596 = vmatpush1.bf16.msra.mxu0 0
    %597 = vmatprep.subr.bf16.mxu0 0
    %598 = vmatpush1.bf16.msra.mxu0 0
    %599 = vmatprep.subr.bf16.mxu0 0
    %600 = vmatpush1.bf16.msra.mxu0 0
    %601 = vmatprep.subr.bf16.mxu0 0
    %602 = vmatpush1.bf16.msra.mxu0 0
    %603 = vmatprep.subr.bf16.mxu0 0
    %604 = vmatpush1.bf16.msra.mxu0 0
    %605 = vmatprep.subr.bf16.mxu0 0
    %606 = vmatpush1.bf16.msra.mxu0 0
    %607 = vmatprep.subr.bf16.mxu0 0
    %608 = vmatpush1.bf16.msra.mxu0 0
    %609 = vmatprep.subr.bf16.mxu0 0
    %610 = vmatpush1.bf16.msra.mxu0 0
    %611 = vmatprep.subr.bf16.mxu0 0
    %612 = vmatpush1.bf16.msra.mxu0 0
    %613 = vmatprep.subr.bf16.mxu0 0
    %614 = vmatpush1.bf16.msra.mxu0 0
    %615 = vmatprep.subr.bf16.mxu0 0
    %616 = vmatpush1.bf16.msra.mxu0 0
    %617 = vmatprep.mubr.bf16.mxu0 0
    %618 = vmatmul.mubr.bf16.gmra.mrb[0].mxu0 %v368
    %v619 = vpop.f32.mrb[0].mxu0
    %v620 = vadd.f32 0.0, %v619
    %v621 = vpop.f32.mrb[0].mxu0
    %v622 = vadd.f32 0.0, %v621
    %v623 = vpop.f32.mrb[0].mxu0
    %v624 = vadd.f32 0.0, %v623
    %v625 = vpop.f32.mrb[0].mxu0
    %v626 = vadd.f32 0.0, %v625
    %627 = vdwg.mxu0
    %628 = vmatprep.subr.bf16.mxu0 %v283
    %629 = vmatpush1.bf16.msra.mxu0 %v282
    %630 = vmatprep.subr.bf16.mxu0 %v307
    %631 = vmatpush1.bf16.msra.mxu0 %v306
    %632 = vmatprep.subr.bf16.mxu0 0
    %633 = vmatpush1.bf16.msra.mxu0 0
    %634 = vmatprep.subr.bf16.mxu0 0
    %635 = vmatpush1.bf16.msra.mxu0 0
    %636 = vmatprep.subr.bf16.mxu0 0
    %637 = vmatpush1.bf16.msra.mxu0 0
    %638 = vmatprep.subr.bf16.mxu0 0
    %639 = vmatpush1.bf16.msra.mxu0 0
    %640 = vmatprep.subr.bf16.mxu0 0
    %641 = vmatpush1.bf16.msra.mxu0 0
    %642 = vmatprep.subr.bf16.mxu0 0
    %643 = vmatpush1.bf16.msra.mxu0 0
    %644 = vmatprep.subr.bf16.mxu0 0
    %645 = vmatpush1.bf16.msra.mxu0 0
    %646 = vmatprep.subr.bf16.mxu0 0
    %647 = vmatpush1.bf16.msra.mxu0 0
    %648 = vmatprep.subr.bf16.mxu0 0
    %649 = vmatpush1.bf16.msra.mxu0 0
    %650 = vmatprep.subr.bf16.mxu0 0
    %651 = vmatpush1.bf16.msra.mxu0 0
    %652 = vmatprep.subr.bf16.mxu0 0
    %653 = vmatpush1.bf16.msra.mxu0 0
    %654 = vmatprep.subr.bf16.mxu0 0
    %655 = vmatpush1.bf16.msra.mxu0 0
    %656 = vmatprep.subr.bf16.mxu0 0
    %657 = vmatpush1.bf16.msra.mxu0 0
    %658 = vmatprep.subr.bf16.mxu0 0
    %659 = vmatpush1.bf16.msra.mxu0 0
    %660 = vmatprep.mubr.bf16.mxu0 0
    %661 = vmatmul.mubr.bf16.gmra.mrb[0].mxu0 %v368
    %v662 = vpop.f32.mrb[0].mxu0
    %v663 = vadd.f32 0.0, %v662
    %v664 = vpop.f32.mrb[0].mxu0
    %v665 = vadd.f32 0.0, %v664
    %v666 = vpop.f32.mrb[0].mxu0
    %v667 = vadd.f32 0.0, %v666
    %v668 = vpop.f32.mrb[0].mxu0
    %v669 = vadd.f32 0.0, %v668
    %670 = vdwg.mxu0
    %671 = vmatprep.subr.bf16.mxu0 %v285
    %672 = vmatpush1.bf16.msra.mxu0 %v284
    %673 = vmatprep.subr.bf16.mxu0 %v309
    %674 = vmatpush1.bf16.msra.mxu0 %v308
    %675 = vmatprep.subr.bf16.mxu0 0
    %676 = vmatpush1.bf16.msra.mxu0 0
    %677 = vmatprep.subr.bf16.mxu0 0
    %678 = vmatpush1.bf16.msra.mxu0 0
    %679 = vmatprep.subr.bf16.mxu0 0
    %680 = vmatpush1.bf16.msra.mxu0 0
    %681 = vmatprep.subr.bf16.mxu0 0
    %682 = vmatpush1.bf16.msra.mxu0 0
    %683 = vmatprep.subr.bf16.mxu0 0
    %684 = vmatpush1.bf16.msra.mxu0 0
    %685 = vmatprep.subr.bf16.mxu0 0
    %686 = vmatpush1.bf16.msra.mxu0 0
    %687 = vmatprep.subr.bf16.mxu0 0
    %688 = vmatpush1.bf16.msra.mxu0 0
    %689 = vmatprep.subr.bf16.mxu0 0
    %690 = vmatpush1.bf16.msra.mxu0 0
    %691 = vmatprep.subr.bf16.mxu0 0
    %692 = vmatpush1.bf16.msra.mxu0 0
    %693 = vmatprep.subr.bf16.mxu0 0
    %694 = vmatpush1.bf16.msra.mxu0 0
    %695 = vmatprep.subr.bf16.mxu0 0
    %696 = vmatpush1.bf16.msra.mxu0 0
    %697 = vmatprep.subr.bf16.mxu0 0
    %698 = vmatpush1.bf16.msra.mxu0 0
    %699 = vmatprep.subr.bf16.mxu0 0
    %700 = vmatpush1.bf16.msra.mxu0 0
    %701 = vmatprep.subr.bf16.mxu0 0
    %702 = vmatpush1.bf16.msra.mxu0 0
    %703 = vmatprep.mubr.bf16.mxu0 0
    %704 = vmatmul.mubr.bf16.gmra.mrb[0].mxu0 %v368
    %v705 = vpop.f32.mrb[0].mxu0
    %v706 = vadd.f32 0.0, %v705
    %v707 = vpop.f32.mrb[0].mxu0
    %v708 = vadd.f32 0.0, %v707
    %v709 = vpop.f32.mrb[0].mxu0
    %v710 = vadd.f32 0.0, %v709
    %v711 = vpop.f32.mrb[0].mxu0
    %v712 = vadd.f32 0.0, %v711
    %713 = vdwg.mxu0
    %714 = vmatprep.subr.bf16.mxu0 %v287
    %715 = vmatpush1.bf16.msra.mxu0 %v286
    %716 = vmatprep.subr.bf16.mxu0 %v311
    %717 = vmatpush1.bf16.msra.mxu0 %v310
    %718 = vmatprep.subr.bf16.mxu0 0
    %719 = vmatpush1.bf16.msra.mxu0 0
    %720 = vmatprep.subr.bf16.mxu0 0
    %721 = vmatpush1.bf16.msra.mxu0 0
    %722 = vmatprep.subr.bf16.mxu0 0
    %723 = vmatpush1.bf16.msra.mxu0 0
    %724 = vmatprep.subr.bf16.mxu0 0
    %725 = vmatpush1.bf16.msra.mxu0 0
    %726 = vmatprep.subr.bf16.mxu0 0
    %727 = vmatpush1.bf16.msra.mxu0 0
    %728 = vmatprep.subr.bf16.mxu0 0
    %729 = vmatpush1.bf16.msra.mxu0 0
    %730 = vmatprep.subr.bf16.mxu0 0
    %731 = vmatpush1.bf16.msra.mxu0 0
    %732 = vmatprep.subr.bf16.mxu0 0
    %733 = vmatpush1.bf16.msra.mxu0 0
    %734 = vmatprep.subr.bf16.mxu0 0
    %735 = vmatpush1.bf16.msra.mxu0 0
    %736 = vmatprep.subr.bf16.mxu0 0
    %737 = vmatpush1.bf16.msra.mxu0 0
    %738 = vmatprep.subr.bf16.mxu0 0
    %739 = vmatpush1.bf16.msra.mxu0 0
    %740 = vmatprep.subr.bf16.mxu0 0
    %741 = vmatpush1.bf16.msra.mxu0 0
    %742 = vmatprep.subr.bf16.mxu0 0
    %743 = vmatpush1.bf16.msra.mxu0 0
    %744 = vmatprep.subr.bf16.mxu0 0
    %745 = vmatpush1.bf16.msra.mxu0 0
    %746 = vmatprep.mubr.bf16.mxu0 0
    %747 = vmatmul.mubr.bf16.gmra.mrb[0].mxu0 %v368
    %v748 = vpop.f32.mrb[0].mxu0
    %v749 = vadd.f32 0.0, %v748
    %v750 = vpop.f32.mrb[0].mxu0
    %v751 = vadd.f32 0.0, %v750
    %v752 = vpop.f32.mrb[0].mxu0
    %v753 = vadd.f32 0.0, %v752
    %v754 = vpop.f32.mrb[0].mxu0
    %v755 = vadd.f32 0.0, %v754
    %756 = vdwg.mxu0
    %757 = vmatprep.subr.bf16.mxu0 %v289
    %758 = vmatpush1.bf16.msra.mxu0 %v288
    %759 = vmatprep.subr.bf16.mxu0 %v313
    %760 = vmatpush1.bf16.msra.mxu0 %v312
    %761 = vmatprep.subr.bf16.mxu0 0
    %762 = vmatpush1.bf16.msra.mxu0 0
    %763 = vmatprep.subr.bf16.mxu0 0
    %764 = vmatpush1.bf16.msra.mxu0 0
    %765 = vmatprep.subr.bf16.mxu0 0
    %766 = vmatpush1.bf16.msra.mxu0 0
    %767 = vmatprep.subr.bf16.mxu0 0
    %768 = vmatpush1.bf16.msra.mxu0 0
    %769 = vmatprep.subr.bf16.mxu0 0
    %770 = vmatpush1.bf16.msra.mxu0 0
    %771 = vmatprep.subr.bf16.mxu0 0
    %772 = vmatpush1.bf16.msra.mxu0 0
    %773 = vmatprep.subr.bf16.mxu0 0
    %774 = vmatpush1.bf16.msra.mxu0 0
    %775 = vmatprep.subr.bf16.mxu0 0
    %776 = vmatpush1.bf16.msra.mxu0 0
    %777 = vmatprep.subr.bf16.mxu0 0
    %778 = vmatpush1.bf16.msra.mxu0 0
    %779 = vmatprep.subr.bf16.mxu0 0
    %780 = vmatpush1.bf16.msra.mxu0 0
    %781 = vmatprep.subr.bf16.mxu0 0
    %782 = vmatpush1.bf16.msra.mxu0 0
    %783 = vmatprep.subr.bf16.mxu0 0
    %784 = vmatpush1.bf16.msra.mxu0 0
    %785 = vmatprep.subr.bf16.mxu0 0
    %786 = vmatpush1.bf16.msra.mxu0 0
    %787 = vmatprep.subr.bf16.mxu0 0
    %788 = vmatpush1.bf16.msra.mxu0 0
    %789 = vmatprep.mubr.bf16.mxu0 0
    %790 = vmatmul.mubr.bf16.gmra.mrb[0].mxu0 %v368
    %v791 = vpop.f32.mrb[0].mxu0
    %v792 = vadd.f32 0.0, %v791
    %v793 = vpop.f32.mrb[0].mxu0
    %v794 = vadd.f32 0.0, %v793
    %v795 = vpop.f32.mrb[0].mxu0
    %v796 = vadd.f32 0.0, %v795
    %v797 = vpop.f32.mrb[0].mxu0
    %v798 = vadd.f32 0.0, %v797
    %799 = vdwg.mxu0
    %800 = vmatprep.subr.bf16.mxu0 %v291
    %801 = vmatpush1.bf16.msra.mxu0 %v290
    %802 = vmatprep.subr.bf16.mxu0 %v315
    %803 = vmatpush1.bf16.msra.mxu0 %v314
    %804 = vmatprep.subr.bf16.mxu0 0
    %805 = vmatpush1.bf16.msra.mxu0 0
    %806 = vmatprep.subr.bf16.mxu0 0
    %807 = vmatpush1.bf16.msra.mxu0 0
    %808 = vmatprep.subr.bf16.mxu0 0
    %809 = vmatpush1.bf16.msra.mxu0 0
    %810 = vmatprep.subr.bf16.mxu0 0
    %811 = vmatpush1.bf16.msra.mxu0 0
    %812 = vmatprep.subr.bf16.mxu0 0
    %813 = vmatpush1.bf16.msra.mxu0 0
    %814 = vmatprep.subr.bf16.mxu0 0
    %815 = vmatpush1.bf16.msra.mxu0 0
    %816 = vmatprep.subr.bf16.mxu0 0
    %817 = vmatpush1.bf16.msra.mxu0 0
    %818 = vmatprep.subr.bf16.mxu0 0
    %819 = vmatpush1.bf16.msra.mxu0 0
    %820 = vmatprep.subr.bf16.mxu0 0
    %821 = vmatpush1.bf16.msra.mxu0 0
    %822 = vmatprep.subr.bf16.mxu0 0
    %823 = vmatpush1.bf16.msra.mxu0 0
    %824 = vmatprep.subr.bf16.mxu0 0
    %825 = vmatpush1.bf16.msra.mxu0 0
    %826 = vmatprep.subr.bf16.mxu0 0
    %827 = vmatpush1.bf16.msra.mxu0 0
    %828 = vmatprep.subr.bf16.mxu0 0
    %829 = vmatpush1.bf16.msra.mxu0 0
    %830 = vmatprep.subr.bf16.mxu0 0
    %831 = vmatpush1.bf16.msra.mxu0 0
    %832 = vmatprep.mubr.bf16.mxu0 0
    %833 = vmatmul.mubr.bf16.gmra.mrb[0].mxu0 %v368
    %v834 = vpop.f32.mrb[0].mxu0
    %v835 = vadd.f32 0.0, %v834
    %v836 = vpop.f32.mrb[0].mxu0
    %v837 = vadd.f32 0.0, %v836
    %v838 = vpop.f32.mrb[0].mxu0
    %v839 = vadd.f32 0.0, %v838
    %v840 = vpop.f32.mrb[0].mxu0
    %v841 = vadd.f32 0.0, %v840
    %842 = vdwg.mxu0
    %843 = vmatprep.subr.bf16.mxu0 %v293
    %844 = vmatpush1.bf16.msra.mxu0 %v292
    %845 = vmatprep.subr.bf16.mxu0 %v317
    %846 = vmatpush1.bf16.msra.mxu0 %v316
    %847 = vmatprep.subr.bf16.mxu0 0
    %848 = vmatpush1.bf16.msra.mxu0 0
    %849 = vmatprep.subr.bf16.mxu0 0
    %850 = vmatpush1.bf16.msra.mxu0 0
    %851 = vmatprep.subr.bf16.mxu0 0
    %852 = vmatpush1.bf16.msra.mxu0 0
    %853 = vmatprep.subr.bf16.mxu0 0
    %854 = vmatpush1.bf16.msra.mxu0 0
    %855 = vmatprep.subr.bf16.mxu0 0
    %856 = vmatpush1.bf16.msra.mxu0 0
    %857 = vmatprep.subr.bf16.mxu0 0
    %858 = vmatpush1.bf16.msra.mxu0 0
    %859 = vmatprep.subr.bf16.mxu0 0
    %860 = vmatpush1.bf16.msra.mxu0 0
    %861 = vmatprep.subr.bf16.mxu0 0
    %862 = vmatpush1.bf16.msra.mxu0 0
    %863 = vmatprep.subr.bf16.mxu0 0
    %864 = vmatpush1.bf16.msra.mxu0 0
    %865 = vmatprep.subr.bf16.mxu0 0
    %866 = vmatpush1.bf16.msra.mxu0 0
    %867 = vmatprep.subr.bf16.mxu0 0
    %868 = vmatpush1.bf16.msra.mxu0 0
    %869 = vmatprep.subr.bf16.mxu0 0
    %870 = vmatpush1.bf16.msra.mxu0 0
    %871 = vmatprep.subr.bf16.mxu0 0
    %872 = vmatpush1.bf16.msra.mxu0 0
    %873 = vmatprep.subr.bf16.mxu0 0
    %874 = vmatpush1.bf16.msra.mxu0 0
    %875 = vmatprep.mubr.bf16.mxu0 0
    %876 = vmatmul.mubr.bf16.gmra.mrb[0].mxu0 %v368
    %v877 = vpop.f32.mrb[0].mxu0
    %v878 = vadd.f32 0.0, %v877
    %v879 = vpop.f32.mrb[0].mxu0
    %v880 = vadd.f32 0.0, %v879
    %v881 = vpop.f32.mrb[0].mxu0
    %v882 = vadd.f32 0.0, %v881
    %v883 = vpop.f32.mrb[0].mxu0
    %v884 = vadd.f32 0.0, %v883
    %885 = vdwg.mxu0
    %p886 = scmp.eq.s32.totalorder 0, 0
    // Predicated region
    $region38: #{mlp_forward.1} parent=1 // pred_check
      %p887 = pneg %p886
    $region39: #{mlp_forward.1} parent=1 // pred_check_branch
      %889 = sbr.rel (%p887) target = $region41
    $region40: #{mlp_forward.1} parent=1 // pred_region
      %v890 = vld [vmem:[#allocation8] sm:$0xff]
      %v891 = vld [vmem:[#allocation8 + $0x8] sm:$0xff]
      %v892 = vld [vmem:[#allocation8 + $0x10] sm:$0xff]
      %v896 = vlaneseq
      %v897 = vshrl.u32 %v896, 7
      %v898 = vsub.s32 0, %v897
      %v899 = vrot.slane %v890, %v898
      %v900 = vlaneseq
      %v901 = vshrl.u32 %v900, 7
      %v902 = vsub.s32 1, %v901
      %v903 = vrot.slane %v890, %v902
      %v904 = vlaneseq
      %v905 = vshrl.u32 %v904, 7
      %v906 = vsub.s32 2, %v905
      %v907 = vrot.slane %v890, %v906
      %v908 = vlaneseq
      %v909 = vshrl.u32 %v908, 7
      %v910 = vsub.s32 3, %v909
      %v911 = vrot.slane %v890, %v910
      %v912 = vlaneseq
      %v913 = vshrl.u32 %v912, 7
      %v914 = vsub.s32 4, %v913
      %v915 = vrot.slane %v890, %v914
      %v916 = vlaneseq
      %v917 = vshrl.u32 %v916, 7
      %v918 = vsub.s32 5, %v917
      %v919 = vrot.slane %v890, %v918
      %v920 = vlaneseq
      %v921 = vshrl.u32 %v920, 7
      %v922 = vsub.s32 6, %v921
      %v923 = vrot.slane %v890, %v922
      %v924 = vlaneseq
      %v925 = vshrl.u32 %v924, 7
      %v926 = vsub.s32 7, %v925
      %v927 = vrot.slane %v890, %v926
      %v928 = vlaneseq
      %v929 = vshrl.u32 %v928, 7
      %v930 = vsub.s32 0, %v929
      %v931 = vrot.slane %v891, %v930
      %v932 = vlaneseq
      %v933 = vshrl.u32 %v932, 7
      %v934 = vsub.s32 1, %v933
      %v935 = vrot.slane %v891, %v934
      %v936 = vlaneseq
      %v937 = vshrl.u32 %v936, 7
      %v938 = vsub.s32 2, %v937
      %v939 = vrot.slane %v891, %v938
      %v940 = vlaneseq
      %v941 = vshrl.u32 %v940, 7
      %v942 = vsub.s32 3, %v941
      %v943 = vrot.slane %v891, %v942
      %v944 = vlaneseq
      %v945 = vshrl.u32 %v944, 7
      %v946 = vsub.s32 4, %v945
      %v947 = vrot.slane %v891, %v946
      %v948 = vlaneseq
      %v949 = vshrl.u32 %v948, 7
      %v950 = vsub.s32 5, %v949
      %v951 = vrot.slane %v891, %v950
      %v952 = vlaneseq
      %v953 = vshrl.u32 %v952, 7
      %v954 = vsub.s32 6, %v953
      %v955 = vrot.slane %v891, %v954
      %v956 = vlaneseq
      %v957 = vshrl.u32 %v956, 7
      %v958 = vsub.s32 7, %v957
      %v959 = vrot.slane %v891, %v958
      %v960 = vlaneseq
      %v961 = vshrl.u32 %v960, 7
      %v962 = vsub.s32 0, %v961
      %v963 = vrot.slane %v892, %v962
      %v964 = vlaneseq
      %v965 = vshrl.u32 %v964, 7
      %v966 = vsub.s32 1, %v965
      %v967 = vrot.slane %v892, %v966
      %v968 = vlaneseq
      %v969 = vshrl.u32 %v968, 7
      %v970 = vsub.s32 2, %v969
      %v971 = vrot.slane %v892, %v970
      %v972 = vlaneseq
      %v973 = vshrl.u32 %v972, 7
      %v974 = vsub.s32 3, %v973
      %v975 = vrot.slane %v892, %v974
      %v976 = vlaneseq
      %v977 = vshrl.u32 %v976, 7
      %v978 = vsub.s32 4, %v977
      %v979 = vrot.slane %v892, %v978
      %v980 = vlaneseq
      %v981 = vshrl.u32 %v980, 7
      %v982 = vsub.s32 5, %v981
      %v983 = vrot.slane %v892, %v982
      %v984 = vlaneseq
      %v985 = vshrl.u32 %v984, 7
      %v986 = vsub.s32 6, %v985
      %v987 = vrot.slane %v892, %v986
      %v988 = vlaneseq
      %v989 = vshrl.u32 %v988, 7
      %v990 = vsub.s32 7, %v989
      %v991 = vrot.slane %v892, %v990
      %v1016 = vadd.f32 %v405, %v899
      %v1017 = vadd.f32 %v407, %v903
      %v1018 = vadd.f32 %v448, %v907
      %v1019 = vadd.f32 %v450, %v911
      %v1020 = vadd.f32 %v491, %v915
      %v1021 = vadd.f32 %v493, %v919
      %v1022 = vadd.f32 %v534, %v923
      %v1023 = vadd.f32 %v536, %v927
      %v1024 = vadd.f32 %v577, %v931
      %v1025 = vadd.f32 %v579, %v935
      %v1026 = vadd.f32 %v620, %v939
      %v1027 = vadd.f32 %v622, %v943
      %v1028 = vadd.f32 %v663, %v947
      %v1029 = vadd.f32 %v665, %v951
      %v1030 = vadd.f32 %v706, %v955
      %v1031 = vadd.f32 %v708, %v959
      %v1032 = vadd.f32 %v749, %v963
      %v1033 = vadd.f32 %v751, %v967
      %v1034 = vadd.f32 %v792, %v971
      %v1035 = vadd.f32 %v794, %v975
      %v1036 = vadd.f32 %v835, %v979
      %v1037 = vadd.f32 %v837, %v983
      %v1038 = vadd.f32 %v878, %v987
      %v1039 = vadd.f32 %v880, %v991
      %v1040 = vadd.f32 %v409, %v899
      %v1041 = vadd.f32 %v411, %v903
      %v1042 = vadd.f32 %v452, %v907
      %v1043 = vadd.f32 %v454, %v911
      %v1044 = vadd.f32 %v495, %v915
      %v1045 = vadd.f32 %v497, %v919
      %v1046 = vadd.f32 %v538, %v923
      %v1047 = vadd.f32 %v540, %v927
      %v1048 = vadd.f32 %v581, %v931
      %v1049 = vadd.f32 %v583, %v935
      %v1050 = vadd.f32 %v624, %v939
      %v1051 = vadd.f32 %v626, %v943
      %v1052 = vadd.f32 %v667, %v947
      %v1053 = vadd.f32 %v669, %v951
      %v1054 = vadd.f32 %v710, %v955
      %v1055 = vadd.f32 %v712, %v959
      %v1056 = vadd.f32 %v753, %v963
      %v1057 = vadd.f32 %v755, %v967
      %v1058 = vadd.f32 %v796, %v971
      %v1059 = vadd.f32 %v798, %v975
      %v1060 = vadd.f32 %v839, %v979
      %v1061 = vadd.f32 %v841, %v983
      %v1062 = vadd.f32 %v882, %v987
      %v1063 = vadd.f32 %v884, %v991
      %1064 = vst [vmem:[#allocation2] sm:$0xff] %v1016
      %1065 = vst [vmem:[#allocation2 + $0x8] sm:$0xff] %v1017
      %1066 = vst [vmem:[#allocation2 + $0x10] sm:$0xff] %v1018
      %1067 = vst [vmem:[#allocation2 + $0x18] sm:$0xff] %v1019
      %1068 = vst [vmem:[#allocation2 + $0x20] sm:$0xff] %v1020
      %1069 = vst [vmem:[#allocation2 + $0x28] sm:$0xff] %v1021
      %1070 = vst [vmem:[#allocation2 + $0x30] sm:$0xff] %v1022
      %1071 = vst [vmem:[#allocation2 + $0x38] sm:$0xff] %v1023
      %1072 = vst [vmem:[#allocation2 + $0x40] sm:$0xff] %v1024
      %1073 = vst [vmem:[#allocation2 + $0x48] sm:$0xff] %v1025
      %1074 = vst [vmem:[#allocation2 + $0x50] sm:$0xff] %v1026
      %1075 = vst [vmem:[#allocation2 + $0x58] sm:$0xff] %v1027
      %1076 = vst [vmem:[#allocation2 + $0x60] sm:$0xff] %v1028
      %1077 = vst [vmem:[#allocation2 + $0x68] sm:$0xff] %v1029
      %1078 = vst [vmem:[#allocation2 + $0x70] sm:$0xff] %v1030
      %1079 = vst [vmem:[#allocation2 + $0x78] sm:$0xff] %v1031
      %1080 = vst [vmem:[#allocation2 + $0x80] sm:$0xff] %v1032
      %1081 = vst [vmem:[#allocation2 + $0x88] sm:$0xff] %v1033
      %1082 = vst [vmem:[#allocation2 + $0x90] sm:$0xff] %v1034
      %1083 = vst [vmem:[#allocation2 + $0x98] sm:$0xff] %v1035
      %1084 = vst [vmem:[#allocation2 + $0xa0] sm:$0xff] %v1036
      %1085 = vst [vmem:[#allocation2 + $0xa8] sm:$0xff] %v1037
      %1086 = vst [vmem:[#allocation2 + $0xb0] sm:$0xff] %v1038
      %1087 = vst [vmem:[#allocation2 + $0xb8] sm:$0xff] %v1039
      %1088 = vst [vmem:[#allocation2 + $0xc0] sm:$0xff] %v1040
      %1089 = vst [vmem:[#allocation2 + $0xc8] sm:$0xff] %v1041
      %1090 = vst [vmem:[#allocation2 + $0xd0] sm:$0xff] %v1042
      %1091 = vst [vmem:[#allocation2 + $0xd8] sm:$0xff] %v1043
      %1092 = vst [vmem:[#allocation2 + $0xe0] sm:$0xff] %v1044
      %1093 = vst [vmem:[#allocation2 + $0xe8] sm:$0xff] %v1045
      %1094 = vst [vmem:[#allocation2 + $0xf0] sm:$0xff] %v1046
      %1095 = vst [vmem:[#allocation2 + $0xf8] sm:$0xff] %v1047
      %1096 = vst [vmem:[#allocation2 + $0x100] sm:$0xff] %v1048
      %1097 = vst [vmem:[#allocation2 + $0x108] sm:$0xff] %v1049
      %1098 = vst [vmem:[#allocation2 + $0x110] sm:$0xff] %v1050
      %1099 = vst [vmem:[#allocation2 + $0x118] sm:$0xff] %v1051
      %1100 = vst [vmem:[#allocation2 + $0x120] sm:$0xff] %v1052
      %1101 = vst [vmem:[#allocation2 + $0x128] sm:$0xff] %v1053
      %1102 = vst [vmem:[#allocation2 + $0x130] sm:$0xff] %v1054
      %1103 = vst [vmem:[#allocation2 + $0x138] sm:$0xff] %v1055
      %1104 = vst [vmem:[#allocation2 + $0x140] sm:$0xff] %v1056
      %1105 = vst [vmem:[#allocation2 + $0x148] sm:$0xff] %v1057
      %1106 = vst [vmem:[#allocation2 + $0x150] sm:$0xff] %v1058
      %1107 = vst [vmem:[#allocation2 + $0x158] sm:$0xff] %v1059
      %1108 = vst [vmem:[#allocation2 + $0x160] sm:$0xff] %v1060
      %1109 = vst [vmem:[#allocation2 + $0x168] sm:$0xff] %v1061
      %1110 = vst [vmem:[#allocation2 + $0x170] sm:$0xff] %v1062
      %1111 = vst [vmem:[#allocation2 + $0x178] sm:$0xff] %v1063
    $region41: #{mlp_forward.1} parent=1 // pred_fallthru
      _
    %p1112 = scmp.gt.s32.totalorder 0, 0
    // Predicated region
    $region42: #{mlp_forward.1} parent=1 // pred_check
      %p1113 = pneg %p1112
    $region43: #{mlp_forward.1} parent=1 // pred_check_branch
      %1115 = sbr.rel (%p1113) target = $region45
    $region44: #{mlp_forward.1} parent=1 // pred_region
      %v1116 = vld [vmem:[#allocation2] sm:$0xff]
      %v1117 = vld [vmem:[#allocation2 + $0x8] sm:$0xff]
      %v1118 = vld [vmem:[#allocation2 + $0x10] sm:$0xff]
      %v1119 = vld [vmem:[#allocation2 + $0x18] sm:$0xff]
      %v1120 = vld [vmem:[#allocation2 + $0x20] sm:$0xff]
      %v1121 = vld [vmem:[#allocation2 + $0x28] sm:$0xff]
      %v1122 = vld [vmem:[#allocation2 + $0x30] sm:$0xff]
      %v1123 = vld [vmem:[#allocation2 + $0x38] sm:$0xff]
      %v1124 = vld [vmem:[#allocation2 + $0x40] sm:$0xff]
      %v1125 = vld [vmem:[#allocation2 + $0x48] sm:$0xff]
      %v1126 = vld [vmem:[#allocation2 + $0x50] sm:$0xff]
      %v1127 = vld [vmem:[#allocation2 + $0x58] sm:$0xff]
      %v1128 = vld [vmem:[#allocation2 + $0x60] sm:$0xff]
      %v1129 = vld [vmem:[#allocation2 + $0x68] sm:$0xff]
      %v1130 = vld [vmem:[#allocation2 + $0x70] sm:$0xff]
      %v1131 = vld [vmem:[#allocation2 + $0x78] sm:$0xff]
      %v1132 = vld [vmem:[#allocation2 + $0x80] sm:$0xff]
      %v1133 = vld [vmem:[#allocation2 + $0x88] sm:$0xff]
      %v1134 = vld [vmem:[#allocation2 + $0x90] sm:$0xff]
      %v1135 = vld [vmem:[#allocation2 + $0x98] sm:$0xff]
      %v1136 = vld [vmem:[#allocation2 + $0xa0] sm:$0xff]
      %v1137 = vld [vmem:[#allocation2 + $0xa8] sm:$0xff]
      %v1138 = vld [vmem:[#allocation2 + $0xb0] sm:$0xff]
      %v1139 = vld [vmem:[#allocation2 + $0xb8] sm:$0xff]
      %v1140 = vld [vmem:[#allocation2 + $0xc0] sm:$0xff]
      %v1141 = vld [vmem:[#allocation2 + $0xc8] sm:$0xff]
      %v1142 = vld [vmem:[#allocation2 + $0xd0] sm:$0xff]
      %v1143 = vld [vmem:[#allocation2 + $0xd8] sm:$0xff]
      %v1144 = vld [vmem:[#allocation2 + $0xe0] sm:$0xff]
      %v1145 = vld [vmem:[#allocation2 + $0xe8] sm:$0xff]
      %v1146 = vld [vmem:[#allocation2 + $0xf0] sm:$0xff]
      %v1147 = vld [vmem:[#allocation2 + $0xf8] sm:$0xff]
      %v1148 = vld [vmem:[#allocation2 + $0x100] sm:$0xff]
      %v1149 = vld [vmem:[#allocation2 + $0x108] sm:$0xff]
      %v1150 = vld [vmem:[#allocation2 + $0x110] sm:$0xff]
      %v1151 = vld [vmem:[#allocation2 + $0x118] sm:$0xff]
      %v1152 = vld [vmem:[#allocation2 + $0x120] sm:$0xff]
      %v1153 = vld [vmem:[#allocation2 + $0x128] sm:$0xff]
      %v1154 = vld [vmem:[#allocation2 + $0x130] sm:$0xff]
      %v1155 = vld [vmem:[#allocation2 + $0x138] sm:$0xff]
      %v1156 = vld [vmem:[#allocation2 + $0x140] sm:$0xff]
      %v1157 = vld [vmem:[#allocation2 + $0x148] sm:$0xff]
      %v1158 = vld [vmem:[#allocation2 + $0x150] sm:$0xff]
      %v1159 = vld [vmem:[#allocation2 + $0x158] sm:$0xff]
      %v1160 = vld [vmem:[#allocation2 + $0x160] sm:$0xff]
      %v1161 = vld [vmem:[#allocation2 + $0x168] sm:$0xff]
      %v1162 = vld [vmem:[#allocation2 + $0x170] sm:$0xff]
      %v1163 = vld [vmem:[#allocation2 + $0x178] sm:$0xff]
      %v1164 = vadd.f32 %v1116, %v405
      %v1165 = vadd.f32 %v1117, %v407
      %v1166 = vadd.f32 %v1118, %v448
      %v1167 = vadd.f32 %v1119, %v450
      %v1168 = vadd.f32 %v1120, %v491
      %v1169 = vadd.f32 %v1121, %v493
      %v1170 = vadd.f32 %v1122, %v534
      %v1171 = vadd.f32 %v1123, %v536
      %v1172 = vadd.f32 %v1124, %v577
      %v1173 = vadd.f32 %v1125, %v579
      %v1174 = vadd.f32 %v1126, %v620
      %v1175 = vadd.f32 %v1127, %v622
      %v1176 = vadd.f32 %v1128, %v663
      %v1177 = vadd.f32 %v1129, %v665
      %v1178 = vadd.f32 %v1130, %v706
      %v1179 = vadd.f32 %v1131, %v708
      %v1180 = vadd.f32 %v1132, %v749
      %v1181 = vadd.f32 %v1133, %v751
      %v1182 = vadd.f32 %v1134, %v792
      %v1183 = vadd.f32 %v1135, %v794
      %v1184 = vadd.f32 %v1136, %v835
      %v1185 = vadd.f32 %v1137, %v837
      %v1186 = vadd.f32 %v1138, %v878
      %v1187 = vadd.f32 %v1139, %v880
      %v1188 = vadd.f32 %v1140, %v409
      %v1189 = vadd.f32 %v1141, %v411
      %v1190 = vadd.f32 %v1142, %v452
      %v1191 = vadd.f32 %v1143, %v454
      %v1192 = vadd.f32 %v1144, %v495
      %v1193 = vadd.f32 %v1145, %v497
      %v1194 = vadd.f32 %v1146, %v538
      %v1195 = vadd.f32 %v1147, %v540
      %v1196 = vadd.f32 %v1148, %v581
      %v1197 = vadd.f32 %v1149, %v583
      %v1198 = vadd.f32 %v1150, %v624
      %v1199 = vadd.f32 %v1151, %v626
      %v1200 = vadd.f32 %v1152, %v667
      %v1201 = vadd.f32 %v1153, %v669
      %v1202 = vadd.f32 %v1154, %v710
      %v1203 = vadd.f32 %v1155, %v712
      %v1204 = vadd.f32 %v1156, %v753
      %v1205 = vadd.f32 %v1157, %v755
      %v1206 = vadd.f32 %v1158, %v796
      %v1207 = vadd.f32 %v1159, %v798
      %v1208 = vadd.f32 %v1160, %v839
      %v1209 = vadd.f32 %v1161, %v841
      %v1210 = vadd.f32 %v1162, %v882
      %v1211 = vadd.f32 %v1163, %v884
      %1212 = vst [vmem:[#allocation2] sm:$0xff] %v1164
      %1213 = vst [vmem:[#allocation2 + $0x8] sm:$0xff] %v1165
      %1214 = vst [vmem:[#allocation2 + $0x10] sm:$0xff] %v1166
      %1215 = vst [vmem:[#allocation2 + $0x18] sm:$0xff] %v1167
      %1216 = vst [vmem:[#allocation2 + $0x20] sm:$0xff] %v1168
      %1217 = vst [vmem:[#allocation2 + $0x28] sm:$0xff] %v1169
      %1218 = vst [vmem:[#allocation2 + $0x30] sm:$0xff] %v1170
      %1219 = vst [vmem:[#allocation2 + $0x38] sm:$0xff] %v1171
      %1220 = vst [vmem:[#allocation2 + $0x40] sm:$0xff] %v1172
      %1221 = vst [vmem:[#allocation2 + $0x48] sm:$0xff] %v1173
      %1222 = vst [vmem:[#allocation2 + $0x50] sm:$0xff] %v1174
      %1223 = vst [vmem:[#allocation2 + $0x58] sm:$0xff] %v1175
      %1224 = vst [vmem:[#allocation2 + $0x60] sm:$0xff] %v1176
      %1225 = vst [vmem:[#allocation2 + $0x68] sm:$0xff] %v1177
      %1226 = vst [vmem:[#allocation2 + $0x70] sm:$0xff] %v1178
      %1227 = vst [vmem:[#allocation2 + $0x78] sm:$0xff] %v1179
      %1228 = vst [vmem:[#allocation2 + $0x80] sm:$0xff] %v1180
      %1229 = vst [vmem:[#allocation2 + $0x88] sm:$0xff] %v1181
      %1230 = vst [vmem:[#allocation2 + $0x90] sm:$0xff] %v1182
      %1231 = vst [vmem:[#allocation2 + $0x98] sm:$0xff] %v1183
      %1232 = vst [vmem:[#allocation2 + $0xa0] sm:$0xff] %v1184
      %1233 = vst [vmem:[#allocation2 + $0xa8] sm:$0xff] %v1185
      %1234 = vst [vmem:[#allocation2 + $0xb0] sm:$0xff] %v1186
      %1235 = vst [vmem:[#allocation2 + $0xb8] sm:$0xff] %v1187
      %1236 = vst [vmem:[#allocation2 + $0xc0] sm:$0xff] %v1188
      %1237 = vst [vmem:[#allocation2 + $0xc8] sm:$0xff] %v1189
      %1238 = vst [vmem:[#allocation2 + $0xd0] sm:$0xff] %v1190
      %1239 = vst [vmem:[#allocation2 + $0xd8] sm:$0xff] %v1191
      %1240 = vst [vmem:[#allocation2 + $0xe0] sm:$0xff] %v1192
      %1241 = vst [vmem:[#allocation2 + $0xe8] sm:$0xff] %v1193
      %1242 = vst [vmem:[#allocation2 + $0xf0] sm:$0xff] %v1194
      %1243 = vst [vmem:[#allocation2 + $0xf8] sm:$0xff] %v1195
      %1244 = vst [vmem:[#allocation2 + $0x100] sm:$0xff] %v1196
      %1245 = vst [vmem:[#allocation2 + $0x108] sm:$0xff] %v1197
      %1246 = vst [vmem:[#allocation2 + $0x110] sm:$0xff] %v1198
      %1247 = vst [vmem:[#allocation2 + $0x118] sm:$0xff] %v1199
      %1248 = vst [vmem:[#allocation2 + $0x120] sm:$0xff] %v1200
      %1249 = vst [vmem:[#allocation2 + $0x128] sm:$0xff] %v1201
      %1250 = vst [vmem:[#allocation2 + $0x130] sm:$0xff] %v1202
      %1251 = vst [vmem:[#allocation2 + $0x138] sm:$0xff] %v1203
      %1252 = vst [vmem:[#allocation2 + $0x140] sm:$0xff] %v1204
      %1253 = vst [vmem:[#allocation2 + $0x148] sm:$0xff] %v1205
      %1254 = vst [vmem:[#allocation2 + $0x150] sm:$0xff] %v1206
      %1255 = vst [vmem:[#allocation2 + $0x158] sm:$0xff] %v1207
      %1256 = vst [vmem:[#allocation2 + $0x160] sm:$0xff] %v1208
      %1257 = vst [vmem:[#allocation2 + $0x168] sm:$0xff] %v1209
      %1258 = vst [vmem:[#allocation2 + $0x170] sm:$0xff] %v1210
      %1259 = vst [vmem:[#allocation2 + $0x178] sm:$0xff] %v1211
    $region45: #{mlp_forward.1} parent=1 // pred_fallthru
      _
    // Predicated region
    $region46: #{mlp_forward.1} parent=1 // pred_check
      %p1260 = pneg %p886
    $region47: #{mlp_forward.1} parent=1 // pred_check_branch
      %1262 = sbr.rel (%p1260) target = $region49
    $region48: #{mlp_forward.1} parent=1 // pred_region
      %v1263 = vld [vmem:[#allocation2] sm:$0xff]
      %v1264 = vld [vmem:[#allocation2 + $0x8] sm:$0xff]
      %v1265 = vld [vmem:[#allocation2 + $0x10] sm:$0xff]
      %v1266 = vld [vmem:[#allocation2 + $0x18] sm:$0xff]
      %v1267 = vld [vmem:[#allocation2 + $0x20] sm:$0xff]
      %v1268 = vld [vmem:[#allocation2 + $0x28] sm:$0xff]
      %v1269 = vld [vmem:[#allocation2 + $0x30] sm:$0xff]
      %v1270 = vld [vmem:[#allocation2 + $0x38] sm:$0xff]
      %v1271 = vld [vmem:[#allocation2 + $0x40] sm:$0xff]
      %v1272 = vld [vmem:[#allocation2 + $0x48] sm:$0xff]
      %v1273 = vld [vmem:[#allocation2 + $0x50] sm:$0xff]
      %v1274 = vld [vmem:[#allocation2 + $0x58] sm:$0xff]
      %v1275 = vld [vmem:[#allocation2 + $0x60] sm:$0xff]
      %v1276 = vld [vmem:[#allocation2 + $0x68] sm:$0xff]
      %v1277 = vld [vmem:[#allocation2 + $0x70] sm:$0xff]
      %v1278 = vld [vmem:[#allocation2 + $0x78] sm:$0xff]
      %v1279 = vld [vmem:[#allocation2 + $0x80] sm:$0xff]
      %v1280 = vld [vmem:[#allocation2 + $0x88] sm:$0xff]
      %v1281 = vld [vmem:[#allocation2 + $0x90] sm:$0xff]
      %v1282 = vld [vmem:[#allocation2 + $0x98] sm:$0xff]
      %v1283 = vld [vmem:[#allocation2 + $0xa0] sm:$0xff]
      %v1284 = vld [vmem:[#allocation2 + $0xa8] sm:$0xff]
      %v1285 = vld [vmem:[#allocation2 + $0xb0] sm:$0xff]
      %v1286 = vld [vmem:[#allocation2 + $0xb8] sm:$0xff]
      %v1287 = vld [vmem:[#allocation2 + $0xc0] sm:$0xff]
      %v1288 = vld [vmem:[#allocation2 + $0xc8] sm:$0xff]
      %v1289 = vld [vmem:[#allocation2 + $0xd0] sm:$0xff]
      %v1290 = vld [vmem:[#allocation2 + $0xd8] sm:$0xff]
      %v1291 = vld [vmem:[#allocation2 + $0xe0] sm:$0xff]
      %v1292 = vld [vmem:[#allocation2 + $0xe8] sm:$0xff]
      %v1293 = vld [vmem:[#allocation2 + $0xf0] sm:$0xff]
      %v1294 = vld [vmem:[#allocation2 + $0xf8] sm:$0xff]
      %v1295 = vld [vmem:[#allocation2 + $0x100] sm:$0xff]
      %v1296 = vld [vmem:[#allocation2 + $0x108] sm:$0xff]
      %v1297 = vld [vmem:[#allocation2 + $0x110] sm:$0xff]
      %v1298 = vld [vmem:[#allocation2 + $0x118] sm:$0xff]
      %v1299 = vld [vmem:[#allocation2 + $0x120] sm:$0xff]
      %v1300 = vld [vmem:[#allocation2 + $0x128] sm:$0xff]
      %v1301 = vld [vmem:[#allocation2 + $0x130] sm:$0xff]
      %v1302 = vld [vmem:[#allocation2 + $0x138] sm:$0xff]
      %v1303 = vld [vmem:[#allocation2 + $0x140] sm:$0xff]
      %v1304 = vld [vmem:[#allocation2 + $0x148] sm:$0xff]
      %v1305 = vld [vmem:[#allocation2 + $0x150] sm:$0xff]
      %v1306 = vld [vmem:[#allocation2 + $0x158] sm:$0xff]
      %v1307 = vld [vmem:[#allocation2 + $0x160] sm:$0xff]
      %v1308 = vld [vmem:[#allocation2 + $0x168] sm:$0xff]
      %v1309 = vld [vmem:[#allocation2 + $0x170] sm:$0xff]
      %v1310 = vld [vmem:[#allocation2 + $0x178] sm:$0xff]
      %v1311 = vpack.c.bf16 %v1287, %v1263
      %v1312 = vpack.c.bf16 %v1288, %v1264
      %v1313 = vpack.c.bf16 %v1289, %v1265
      %v1314 = vpack.c.bf16 %v1290, %v1266
      %v1315 = vpack.c.bf16 %v1291, %v1267
      %v1316 = vpack.c.bf16 %v1292, %v1268
      %v1317 = vpack.c.bf16 %v1293, %v1269
      %v1318 = vpack.c.bf16 %v1294, %v1270
      %v1319 = vpack.c.bf16 %v1295, %v1271
      %v1320 = vpack.c.bf16 %v1296, %v1272
      %v1321 = vpack.c.bf16 %v1297, %v1273
      %v1322 = vpack.c.bf16 %v1298, %v1274
      %v1323 = vpack.c.bf16 %v1299, %v1275
      %v1324 = vpack.c.bf16 %v1300, %v1276
      %v1325 = vpack.c.bf16 %v1301, %v1277
      %v1326 = vpack.c.bf16 %v1302, %v1278
      %v1327 = vpack.c.bf16 %v1303, %v1279
      %v1328 = vpack.c.bf16 %v1304, %v1280
      %v1329 = vpack.c.bf16 %v1305, %v1281
      %v1330 = vpack.c.bf16 %v1306, %v1282
      %v1331 = vpack.c.bf16 %v1307, %v1283
      %v1332 = vpack.c.bf16 %v1308, %v1284
      %v1333 = vpack.c.bf16 %v1309, %v1285
      %v1334 = vpack.c.bf16 %v1310, %v1286
      %v1335 = vld [vmem:[#allocation9] sm:$0xf]
      %v1336 = vld [vmem:[#allocation9 + $0x4] sm:$0xf]
      %v1337 = vld [vmem:[#allocation9 + $0x8] sm:$0xf]
      %v1338 = vld [vmem:[#allocation9 + $0xc] sm:$0xf]
      %v1339 = vld [vmem:[#allocation9 + $0x10] sm:$0xf]
      %v1340 = vld [vmem:[#allocation9 + $0x14] sm:$0xf]
      %v1341 = vld [vmem:[#allocation9 + $0x18] sm:$0xf]
      %v1342 = vld [vmem:[#allocation9 + $0x1c] sm:$0xf]
      %v1343 = vld [vmem:[#allocation9 + $0x20] sm:$0xf]
      %v1344 = vld [vmem:[#allocation9 + $0x24] sm:$0xf]
      %v1345 = vld [vmem:[#allocation9 + $0x28] sm:$0xf]
      %v1346 = vld [vmem:[#allocation9 + $0x2c] sm:$0xf]
      %v1347 = vld [vmem:[#allocation9 + $0x30] sm:$0xf]
      %v1348 = vld [vmem:[#allocation9 + $0x34] sm:$0xf]
      %v1349 = vld [vmem:[#allocation9 + $0x38] sm:$0xf]
      %v1350 = vld [vmem:[#allocation9 + $0x3c] sm:$0xf]
      %v1351 = vld [vmem:[#allocation9 + $0x40] sm:$0xf]
      %v1352 = vld [vmem:[#allocation9 + $0x44] sm:$0xf]
      %v1353 = vld [vmem:[#allocation9 + $0x48] sm:$0xf]
      %v1354 = vld [vmem:[#allocation9 + $0x4c] sm:$0xf]
      %v1355 = vld [vmem:[#allocation9 + $0x50] sm:$0xf]
      %v1356 = vld [vmem:[#allocation9 + $0x54] sm:$0xf]
      %v1357 = vld [vmem:[#allocation9 + $0x58] sm:$0xf]
      %v1358 = vld [vmem:[#allocation9 + $0x5c] sm:$0xf]
      %v1359 = vld [vmem:[#allocation9 + $0x60] sm:$0xf]
      %v1360 = vld [vmem:[#allocation9 + $0x64] sm:$0xf]
      %v1361 = vld [vmem:[#allocation9 + $0x68] sm:$0xf]
      %v1362 = vld [vmem:[#allocation9 + $0x6c] sm:$0xf]
      %v1363 = vld [vmem:[#allocation9 + $0x70] sm:$0xf]
      %v1364 = vld [vmem:[#allocation9 + $0x74] sm:$0xf]
      %v1365 = vld [vmem:[#allocation9 + $0x78] sm:$0xf]
      %v1366 = vld [vmem:[#allocation9 + $0x7c] sm:$0xf]
      %v1367 = vld [vmem:[#allocation9 + $0x80] sm:$0xf]
      %v1368 = vld [vmem:[#allocation9 + $0x84] sm:$0xf]
      %v1369 = vld [vmem:[#allocation9 + $0x88] sm:$0xf]
      %v1370 = vld [vmem:[#allocation9 + $0x8c] sm:$0xf]
      %v1371 = vld [vmem:[#allocation9 + $0x90] sm:$0xf]
      %v1372 = vld [vmem:[#allocation9 + $0x94] sm:$0xf]
      %v1373 = vld [vmem:[#allocation9 + $0x98] sm:$0xf]
      %v1374 = vld [vmem:[#allocation9 + $0x9c] sm:$0xf]
      %v1375 = vld [vmem:[#allocation9 + $0xa0] sm:$0xf]
      %v1376 = vld [vmem:[#allocation9 + $0xa4] sm:$0xf]
      %v1377 = vld [vmem:[#allocation9 + $0xa8] sm:$0xf]
      %v1378 = vld [vmem:[#allocation9 + $0xac] sm:$0xf]
      %v1379 = vld [vmem:[#allocation9 + $0xb0] sm:$0xf]
      %v1380 = vld [vmem:[#allocation9 + $0xb4] sm:$0xf]
      %v1381 = vld [vmem:[#allocation9 + $0xb8] sm:$0xf]
      %v1382 = vld [vmem:[#allocation9 + $0xbc] sm:$0xf]
      %v1383 = vld [vmem:[#allocation9 + $0xc0] sm:$0xf]
      %v1384 = vld [vmem:[#allocation9 + $0xc4] sm:$0xf]
      %v1385 = vld [vmem:[#allocation9 + $0xc8] sm:$0xf]
      %v1386 = vld [vmem:[#allocation9 + $0xcc] sm:$0xf]
      %v1387 = vld [vmem:[#allocation9 + $0xd0] sm:$0xf]
      %v1388 = vld [vmem:[#allocation9 + $0xd4] sm:$0xf]
      %v1389 = vld [vmem:[#allocation9 + $0xd8] sm:$0xf]
      %v1390 = vld [vmem:[#allocation9 + $0xdc] sm:$0xf]
      %v1391 = vld [vmem:[#allocation9 + $0xe0] sm:$0xf]
      %v1392 = vld [vmem:[#allocation9 + $0xe4] sm:$0xf]
      %v1393 = vld [vmem:[#allocation9 + $0xe8] sm:$0xf]
      %v1394 = vld [vmem:[#allocation9 + $0xec] sm:$0xf]
      %v1395 = vld [vmem:[#allocation9 + $0xf0] sm:$0xf]
      %v1396 = vld [vmem:[#allocation9 + $0xf4] sm:$0xf]
      %v1397 = vld [vmem:[#allocation9 + $0xf8] sm:$0xf]
      %v1398 = vld [vmem:[#allocation9 + $0xfc] sm:$0xf]
      %v1399 = vld [vmem:[#allocation9 + $0x100] sm:$0xf]
      %v1400 = vld [vmem:[#allocation9 + $0x104] sm:$0xf]
      %v1401 = vld [vmem:[#allocation9 + $0x108] sm:$0xf]
      %v1402 = vld [vmem:[#allocation9 + $0x10c] sm:$0xf]
      %v1403 = vld [vmem:[#allocation9 + $0x110] sm:$0xf]
      %v1404 = vld [vmem:[#allocation9 + $0x114] sm:$0xf]
      %v1405 = vld [vmem:[#allocation9 + $0x118] sm:$0xf]
      %v1406 = vld [vmem:[#allocation9 + $0x11c] sm:$0xf]
      %v1407 = vld [vmem:[#allocation9 + $0x120] sm:$0xf]
      %v1408 = vld [vmem:[#allocation9 + $0x124] sm:$0xf]
      %v1409 = vld [vmem:[#allocation9 + $0x128] sm:$0xf]
      %v1410 = vld [vmem:[#allocation9 + $0x12c] sm:$0xf]
      %v1411 = vld [vmem:[#allocation9 + $0x130] sm:$0xf]
      %v1412 = vld [vmem:[#allocation9 + $0x134] sm:$0xf]
      %v1413 = vld [vmem:[#allocation9 + $0x138] sm:$0xf]
      %v1414 = vld [vmem:[#allocation9 + $0x13c] sm:$0xf]
      %v1415 = vld [vmem:[#allocation9 + $0x140] sm:$0xf]
      %v1416 = vld [vmem:[#allocation9 + $0x144] sm:$0xf]
      %v1417 = vld [vmem:[#allocation9 + $0x148] sm:$0xf]
      %v1418 = vld [vmem:[#allocation9 + $0x14c] sm:$0xf]
      %v1419 = vld [vmem:[#allocation9 + $0x150] sm:$0xf]
      %v1420 = vld [vmem:[#allocation9 + $0x154] sm:$0xf]
      %v1421 = vld [vmem:[#allocation9 + $0x158] sm:$0xf]
      %v1422 = vld [vmem:[#allocation9 + $0x15c] sm:$0xf]
      %v1423 = vld [vmem:[#allocation9 + $0x160] sm:$0xf]
      %v1424 = vld [vmem:[#allocation9 + $0x164] sm:$0xf]
      %v1425 = vld [vmem:[#allocation9 + $0x168] sm:$0xf]
      %v1426 = vld [vmem:[#allocation9 + $0x16c] sm:$0xf]
      %v1427 = vld [vmem:[#allocation9 + $0x170] sm:$0xf]
      %v1428 = vld [vmem:[#allocation9 + $0x174] sm:$0xf]
      %v1429 = vld [vmem:[#allocation9 + $0x178] sm:$0xf]
      %v1430 = vld [vmem:[#allocation9 + $0x17c] sm:$0xf]
      %v1431 = vld [vmem:[#allocation9 + $0x180] sm:$0xf]
      %v1432 = vld [vmem:[#allocation9 + $0x184] sm:$0xf]
      %v1433 = vld [vmem:[#allocation9 + $0x188] sm:$0xf]
      %v1434 = vld [vmem:[#allocation9 + $0x18c] sm:$0xf]
      %v1435 = vld [vmem:[#allocation9 + $0x190] sm:$0xf]
      %v1436 = vld [vmem:[#allocation9 + $0x194] sm:$0xf]
      %v1437 = vld [vmem:[#allocation9 + $0x198] sm:$0xf]
      %v1438 = vld [vmem:[#allocation9 + $0x19c] sm:$0xf]
      %v1439 = vld [vmem:[#allocation9 + $0x1a0] sm:$0xf]
      %v1440 = vld [vmem:[#allocation9 + $0x1a4] sm:$0xf]
      %v1441 = vld [vmem:[#allocation9 + $0x1a8] sm:$0xf]
      %v1442 = vld [vmem:[#allocation9 + $0x1ac] sm:$0xf]
      %v1443 = vld [vmem:[#allocation9 + $0x1b0] sm:$0xf]
      %v1444 = vld [vmem:[#allocation9 + $0x1b4] sm:$0xf]
      %v1445 = vld [vmem:[#allocation9 + $0x1b8] sm:$0xf]
      %v1446 = vld [vmem:[#allocation9 + $0x1bc] sm:$0xf]
      %v1447 = vld [vmem:[#allocation9 + $0x1c0] sm:$0xf]
      %v1448 = vld [vmem:[#allocation9 + $0x1c4] sm:$0xf]
      %v1449 = vld [vmem:[#allocation9 + $0x1c8] sm:$0xf]
      %v1450 = vld [vmem:[#allocation9 + $0x1cc] sm:$0xf]
      %v1451 = vld [vmem:[#allocation9 + $0x1d0] sm:$0xf]
      %v1452 = vld [vmem:[#allocation9 + $0x1d4] sm:$0xf]
      %v1453 = vld [vmem:[#allocation9 + $0x1d8] sm:$0xf]
      %v1454 = vld [vmem:[#allocation9 + $0x1dc] sm:$0xf]
      %v1455 = vld [vmem:[#allocation9 + $0x1e0] sm:$0xf]
      %v1456 = vld [vmem:[#allocation9 + $0x1e4] sm:$0xf]
      %v1457 = vld [vmem:[#allocation9 + $0x1e8] sm:$0xf]
      %v1458 = vld [vmem:[#allocation9 + $0x1ec] sm:$0xf]
      %v1459 = vld [vmem:[#allocation9 + $0x1f0] sm:$0xf]
      %v1460 = vld [vmem:[#allocation9 + $0x1f4] sm:$0xf]
      %v1461 = vld [vmem:[#allocation9 + $0x1f8] sm:$0xf]
      %v1462 = vld [vmem:[#allocation9 + $0x1fc] sm:$0xf]
      %v1463 = vld [vmem:[#allocation9 + $0x200] sm:$0xf]
      %v1464 = vld [vmem:[#allocation9 + $0x204] sm:$0xf]
      %v1465 = vld [vmem:[#allocation9 + $0x208] sm:$0xf]
      %v1466 = vld [vmem:[#allocation9 + $0x20c] sm:$0xf]
      %v1467 = vld [vmem:[#allocation9 + $0x210] sm:$0xf]
      %v1468 = vld [vmem:[#allocation9 + $0x214] sm:$0xf]
      %v1469 = vld [vmem:[#allocation9 + $0x218] sm:$0xf]
      %v1470 = vld [vmem:[#allocation9 + $0x21c] sm:$0xf]
      %v1471 = vld [vmem:[#allocation9 + $0x220] sm:$0xf]
      %v1472 = vld [vmem:[#allocation9 + $0x224] sm:$0xf]
      %v1473 = vld [vmem:[#allocation9 + $0x228] sm:$0xf]
      %v1474 = vld [vmem:[#allocation9 + $0x22c] sm:$0xf]
      %v1475 = vld [vmem:[#allocation9 + $0x230] sm:$0xf]
      %v1476 = vld [vmem:[#allocation9 + $0x234] sm:$0xf]
      %v1477 = vld [vmem:[#allocation9 + $0x238] sm:$0xf]
      %v1478 = vld [vmem:[#allocation9 + $0x23c] sm:$0xf]
      %v1479 = vld [vmem:[#allocation9 + $0x240] sm:$0xf]
      %v1480 = vld [vmem:[#allocation9 + $0x244] sm:$0xf]
      %v1481 = vld [vmem:[#allocation9 + $0x248] sm:$0xf]
      %v1482 = vld [vmem:[#allocation9 + $0x24c] sm:$0xf]
      %v1483 = vld [vmem:[#allocation9 + $0x250] sm:$0xf]
      %v1484 = vld [vmem:[#allocation9 + $0x254] sm:$0xf]
      %v1485 = vld [vmem:[#allocation9 + $0x258] sm:$0xf]
      %v1486 = vld [vmem:[#allocation9 + $0x25c] sm:$0xf]
      %v1487 = vld [vmem:[#allocation9 + $0x260] sm:$0xf]
      %v1488 = vld [vmem:[#allocation9 + $0x264] sm:$0xf]
      %v1489 = vld [vmem:[#allocation9 + $0x268] sm:$0xf]
      %v1490 = vld [vmem:[#allocation9 + $0x26c] sm:$0xf]
      %v1491 = vld [vmem:[#allocation9 + $0x270] sm:$0xf]
      %v1492 = vld [vmem:[#allocation9 + $0x274] sm:$0xf]
      %v1493 = vld [vmem:[#allocation9 + $0x278] sm:$0xf]
      %v1494 = vld [vmem:[#allocation9 + $0x27c] sm:$0xf]
      %v1495 = vld [vmem:[#allocation9 + $0x280] sm:$0xf]
      %v1496 = vld [vmem:[#allocation9 + $0x284] sm:$0xf]
      %v1497 = vld [vmem:[#allocation9 + $0x288] sm:$0xf]
      %v1498 = vld [vmem:[#allocation9 + $0x28c] sm:$0xf]
      %v1499 = vld [vmem:[#allocation9 + $0x290] sm:$0xf]
      %v1500 = vld [vmem:[#allocation9 + $0x294] sm:$0xf]
      %v1501 = vld [vmem:[#allocation9 + $0x298] sm:$0xf]
      %v1502 = vld [vmem:[#allocation9 + $0x29c] sm:$0xf]
      %v1503 = vld [vmem:[#allocation9 + $0x2a0] sm:$0xf]
      %v1504 = vld [vmem:[#allocation9 + $0x2a4] sm:$0xf]
      %v1505 = vld [vmem:[#allocation9 + $0x2a8] sm:$0xf]
      %v1506 = vld [vmem:[#allocation9 + $0x2ac] sm:$0xf]
      %v1507 = vld [vmem:[#allocation9 + $0x2b0] sm:$0xf]
      %v1508 = vld [vmem:[#allocation9 + $0x2b4] sm:$0xf]
      %v1509 = vld [vmem:[#allocation9 + $0x2b8] sm:$0xf]
      %v1510 = vld [vmem:[#allocation9 + $0x2bc] sm:$0xf]
      %v1511 = vld [vmem:[#allocation9 + $0x2c0] sm:$0xf]
      %v1512 = vld [vmem:[#allocation9 + $0x2c4] sm:$0xf]
      %v1513 = vld [vmem:[#allocation9 + $0x2c8] sm:$0xf]
      %v1514 = vld [vmem:[#allocation9 + $0x2cc] sm:$0xf]
      %v1515 = vld [vmem:[#allocation9 + $0x2d0] sm:$0xf]
      %v1516 = vld [vmem:[#allocation9 + $0x2d4] sm:$0xf]
      %v1517 = vld [vmem:[#allocation9 + $0x2d8] sm:$0xf]
      %v1518 = vld [vmem:[#allocation9 + $0x2dc] sm:$0xf]
      %v1519 = vld [vmem:[#allocation9 + $0x2e0] sm:$0xf]
      %v1520 = vld [vmem:[#allocation9 + $0x2e4] sm:$0xf]
      %v1521 = vld [vmem:[#allocation9 + $0x2e8] sm:$0xf]
      %v1522 = vld [vmem:[#allocation9 + $0x2ec] sm:$0xf]
      %v1523 = vld [vmem:[#allocation9 + $0x2f0] sm:$0xf]
      %v1524 = vld [vmem:[#allocation9 + $0x2f4] sm:$0xf]
      %v1525 = vld [vmem:[#allocation9 + $0x2f8] sm:$0xf]
      %v1526 = vld [vmem:[#allocation9 + $0x2fc] sm:$0xf]
      %v1527 = vld [vmem:[#allocation9 + $0x300] sm:$0xf]
      %v1528 = vld [vmem:[#allocation9 + $0x304] sm:$0xf]
      %v1529 = vld [vmem:[#allocation9 + $0x308] sm:$0xf]
      %v1530 = vld [vmem:[#allocation9 + $0x30c] sm:$0xf]
      %v1531 = vld [vmem:[#allocation9 + $0x310] sm:$0xf]
      %v1532 = vld [vmem:[#allocation9 + $0x314] sm:$0xf]
      %v1533 = vld [vmem:[#allocation9 + $0x318] sm:$0xf]
      %v1534 = vld [vmem:[#allocation9 + $0x31c] sm:$0xf]
      %v1535 = vld [vmem:[#allocation9 + $0x320] sm:$0xf]
      %v1536 = vld [vmem:[#allocation9 + $0x324] sm:$0xf]
      %v1537 = vld [vmem:[#allocation9 + $0x328] sm:$0xf]
      %v1538 = vld [vmem:[#allocation9 + $0x32c] sm:$0xf]
      %v1539 = vld [vmem:[#allocation9 + $0x330] sm:$0xf]
      %v1540 = vld [vmem:[#allocation9 + $0x334] sm:$0xf]
      %v1541 = vld [vmem:[#allocation9 + $0x338] sm:$0xf]
      %v1542 = vld [vmem:[#allocation9 + $0x33c] sm:$0xf]
      %v1543 = vld [vmem:[#allocation9 + $0x340] sm:$0xf]
      %v1544 = vld [vmem:[#allocation9 + $0x344] sm:$0xf]
      %v1545 = vld [vmem:[#allocation9 + $0x348] sm:$0xf]
      %v1546 = vld [vmem:[#allocation9 + $0x34c] sm:$0xf]
      %v1547 = vld [vmem:[#allocation9 + $0x350] sm:$0xf]
      %v1548 = vld [vmem:[#allocation9 + $0x354] sm:$0xf]
      %v1549 = vld [vmem:[#allocation9 + $0x358] sm:$0xf]
      %v1550 = vld [vmem:[#allocation9 + $0x35c] sm:$0xf]
      %v1551 = vld [vmem:[#allocation9 + $0x360] sm:$0xf]
      %v1552 = vld [vmem:[#allocation9 + $0x364] sm:$0xf]
      %v1553 = vld [vmem:[#allocation9 + $0x368] sm:$0xf]
      %v1554 = vld [vmem:[#allocation9 + $0x36c] sm:$0xf]
      %v1555 = vld [vmem:[#allocation9 + $0x370] sm:$0xf]
      %v1556 = vld [vmem:[#allocation9 + $0x374] sm:$0xf]
      %v1557 = vld [vmem:[#allocation9 + $0x378] sm:$0xf]
      %v1558 = vld [vmem:[#allocation9 + $0x37c] sm:$0xf]
      %v1559 = vld [vmem:[#allocation9 + $0x380] sm:$0xf]
      %v1560 = vld [vmem:[#allocation9 + $0x384] sm:$0xf]
      %v1561 = vld [vmem:[#allocation9 + $0x388] sm:$0xf]
      %v1562 = vld [vmem:[#allocation9 + $0x38c] sm:$0xf]
      %v1563 = vld [vmem:[#allocation9 + $0x390] sm:$0xf]
      %v1564 = vld [vmem:[#allocation9 + $0x394] sm:$0xf]
      %v1565 = vld [vmem:[#allocation9 + $0x398] sm:$0xf]
      %v1566 = vld [vmem:[#allocation9 + $0x39c] sm:$0xf]
      %v1567 = vld [vmem:[#allocation9 + $0x3a0] sm:$0xf]
      %v1568 = vld [vmem:[#allocation9 + $0x3a4] sm:$0xf]
      %v1569 = vld [vmem:[#allocation9 + $0x3a8] sm:$0xf]
      %v1570 = vld [vmem:[#allocation9 + $0x3ac] sm:$0xf]
      %v1571 = vld [vmem:[#allocation9 + $0x3b0] sm:$0xf]
      %v1572 = vld [vmem:[#allocation9 + $0x3b4] sm:$0xf]
      %v1573 = vld [vmem:[#allocation9 + $0x3b8] sm:$0xf]
      %v1574 = vld [vmem:[#allocation9 + $0x3bc] sm:$0xf]
      %v1575 = vld [vmem:[#allocation9 + $0x3c0] sm:$0xf]
      %v1576 = vld [vmem:[#allocation9 + $0x3c4] sm:$0xf]
      %v1577 = vld [vmem:[#allocation9 + $0x3c8] sm:$0xf]
      %v1578 = vld [vmem:[#allocation9 + $0x3cc] sm:$0xf]
      %v1579 = vld [vmem:[#allocation9 + $0x3d0] sm:$0xf]
      %v1580 = vld [vmem:[#allocation9 + $0x3d4] sm:$0xf]
      %v1581 = vld [vmem:[#allocation9 + $0x3d8] sm:$0xf]
      %v1582 = vld [vmem:[#allocation9 + $0x3dc] sm:$0xf]
      %v1583 = vld [vmem:[#allocation9 + $0x3e0] sm:$0xf]
      %v1584 = vld [vmem:[#allocation9 + $0x3e4] sm:$0xf]
      %v1585 = vld [vmem:[#allocation9 + $0x3e8] sm:$0xf]
      %v1586 = vld [vmem:[#allocation9 + $0x3ec] sm:$0xf]
      %v1587 = vld [vmem:[#allocation9 + $0x3f0] sm:$0xf]
      %v1588 = vld [vmem:[#allocation9 + $0x3f4] sm:$0xf]
      %v1589 = vld [vmem:[#allocation9 + $0x3f8] sm:$0xf]
      %v1590 = vld [vmem:[#allocation9 + $0x3fc] sm:$0xf]
      %v1591 = vld [vmem:[#allocation9 + $0x400] sm:$0xf]
      %v1592 = vld [vmem:[#allocation9 + $0x404] sm:$0xf]
      %v1593 = vld [vmem:[#allocation9 + $0x408] sm:$0xf]
      %v1594 = vld [vmem:[#allocation9 + $0x40c] sm:$0xf]
      %v1595 = vld [vmem:[#allocation9 + $0x410] sm:$0xf]
      %v1596 = vld [vmem:[#allocation9 + $0x414] sm:$0xf]
      %v1597 = vld [vmem:[#allocation9 + $0x418] sm:$0xf]
      %v1598 = vld [vmem:[#allocation9 + $0x41c] sm:$0xf]
      %v1599 = vld [vmem:[#allocation9 + $0x420] sm:$0xf]
      %v1600 = vld [vmem:[#allocation9 + $0x424] sm:$0xf]
      %v1601 = vld [vmem:[#allocation9 + $0x428] sm:$0xf]
      %v1602 = vld [vmem:[#allocation9 + $0x42c] sm:$0xf]
      %v1603 = vld [vmem:[#allocation9 + $0x430] sm:$0xf]
      %v1604 = vld [vmem:[#allocation9 + $0x434] sm:$0xf]
      %v1605 = vld [vmem:[#allocation9 + $0x438] sm:$0xf]
      %v1606 = vld [vmem:[#allocation9 + $0x43c] sm:$0xf]
      %v1607 = vld [vmem:[#allocation9 + $0x440] sm:$0xf]
      %v1608 = vld [vmem:[#allocation9 + $0x444] sm:$0xf]
      %v1609 = vld [vmem:[#allocation9 + $0x448] sm:$0xf]
      %v1610 = vld [vmem:[#allocation9 + $0x44c] sm:$0xf]
      %v1611 = vld [vmem:[#allocation9 + $0x450] sm:$0xf]
      %v1612 = vld [vmem:[#allocation9 + $0x454] sm:$0xf]
      %v1613 = vld [vmem:[#allocation9 + $0x458] sm:$0xf]
      %v1614 = vld [vmem:[#allocation9 + $0x45c] sm:$0xf]
      %v1615 = vld [vmem:[#allocation9 + $0x460] sm:$0xf]
      %v1616 = vld [vmem:[#allocation9 + $0x464] sm:$0xf]
      %v1617 = vld [vmem:[#allocation9 + $0x468] sm:$0xf]
      %v1618 = vld [vmem:[#allocation9 + $0x46c] sm:$0xf]
      %v1619 = vld [vmem:[#allocation9 + $0x470] sm:$0xf]
      %v1620 = vld [vmem:[#allocation9 + $0x474] sm:$0xf]
      %v1621 = vld [vmem:[#allocation9 + $0x478] sm:$0xf]
      %v1622 = vld [vmem:[#allocation9 + $0x47c] sm:$0xf]
      %v1623 = vld [vmem:[#allocation9 + $0x480] sm:$0xf]
      %v1624 = vld [vmem:[#allocation9 + $0x484] sm:$0xf]
      %v1625 = vld [vmem:[#allocation9 + $0x488] sm:$0xf]
      %v1626 = vld [vmem:[#allocation9 + $0x48c] sm:$0xf]
      %v1627 = vld [vmem:[#allocation9 + $0x490] sm:$0xf]
      %v1628 = vld [vmem:[#allocation9 + $0x494] sm:$0xf]
      %v1629 = vld [vmem:[#allocation9 + $0x498] sm:$0xf]
      %v1630 = vld [vmem:[#allocation9 + $0x49c] sm:$0xf]
      %v1631 = vld [vmem:[#allocation9 + $0x4a0] sm:$0xf]
      %v1632 = vld [vmem:[#allocation9 + $0x4a4] sm:$0xf]
      %v1633 = vld [vmem:[#allocation9 + $0x4a8] sm:$0xf]
      %v1634 = vld [vmem:[#allocation9 + $0x4ac] sm:$0xf]
      %v1635 = vld [vmem:[#allocation9 + $0x4b0] sm:$0xf]
      %v1636 = vld [vmem:[#allocation9 + $0x4b4] sm:$0xf]
      %v1637 = vld [vmem:[#allocation9 + $0x4b8] sm:$0xf]
      %v1638 = vld [vmem:[#allocation9 + $0x4bc] sm:$0xf]
      %v1639 = vld [vmem:[#allocation9 + $0x4c0] sm:$0xf]
      %v1640 = vld [vmem:[#allocation9 + $0x4c4] sm:$0xf]
      %v1641 = vld [vmem:[#allocation9 + $0x4c8] sm:$0xf]
      %v1642 = vld [vmem:[#allocation9 + $0x4cc] sm:$0xf]
      %v1643 = vld [vmem:[#allocation9 + $0x4d0] sm:$0xf]
      %v1644 = vld [vmem:[#allocation9 + $0x4d4] sm:$0xf]
      %v1645 = vld [vmem:[#allocation9 + $0x4d8] sm:$0xf]
      %v1646 = vld [vmem:[#allocation9 + $0x4dc] sm:$0xf]
      %v1647 = vld [vmem:[#allocation9 + $0x4e0] sm:$0xf]
      %v1648 = vld [vmem:[#allocation9 + $0x4e4] sm:$0xf]
      %v1649 = vld [vmem:[#allocation9 + $0x4e8] sm:$0xf]
      %v1650 = vld [vmem:[#allocation9 + $0x4ec] sm:$0xf]
      %v1651 = vld [vmem:[#allocation9 + $0x4f0] sm:$0xf]
      %v1652 = vld [vmem:[#allocation9 + $0x4f4] sm:$0xf]
      %v1653 = vld [vmem:[#allocation9 + $0x4f8] sm:$0xf]
      %v1654 = vld [vmem:[#allocation9 + $0x4fc] sm:$0xf]
      %v1655 = vld [vmem:[#allocation9 + $0x500] sm:$0xf]
      %v1656 = vld [vmem:[#allocation9 + $0x504] sm:$0xf]
      %v1657 = vld [vmem:[#allocation9 + $0x508] sm:$0xf]
      %v1658 = vld [vmem:[#allocation9 + $0x50c] sm:$0xf]
      %v1659 = vld [vmem:[#allocation9 + $0x510] sm:$0xf]
      %v1660 = vld [vmem:[#allocation9 + $0x514] sm:$0xf]
      %v1661 = vld [vmem:[#allocation9 + $0x518] sm:$0xf]
      %v1662 = vld [vmem:[#allocation9 + $0x51c] sm:$0xf]
      %v1663 = vld [vmem:[#allocation9 + $0x520] sm:$0xf]
      %v1664 = vld [vmem:[#allocation9 + $0x524] sm:$0xf]
      %v1665 = vld [vmem:[#allocation9 + $0x528] sm:$0xf]
      %v1666 = vld [vmem:[#allocation9 + $0x52c] sm:$0xf]
      %v1667 = vld [vmem:[#allocation9 + $0x530] sm:$0xf]
      %v1668 = vld [vmem:[#allocation9 + $0x534] sm:$0xf]
      %v1669 = vld [vmem:[#allocation9 + $0x538] sm:$0xf]
      %v1670 = vld [vmem:[#allocation9 + $0x53c] sm:$0xf]
      %v1671 = vld [vmem:[#allocation9 + $0x540] sm:$0xf]
      %v1672 = vld [vmem:[#allocation9 + $0x544] sm:$0xf]
      %v1673 = vld [vmem:[#allocation9 + $0x548] sm:$0xf]
      %v1674 = vld [vmem:[#allocation9 + $0x54c] sm:$0xf]
      %v1675 = vld [vmem:[#allocation9 + $0x550] sm:$0xf]
      %v1676 = vld [vmem:[#allocation9 + $0x554] sm:$0xf]
      %v1677 = vld [vmem:[#allocation9 + $0x558] sm:$0xf]
      %v1678 = vld [vmem:[#allocation9 + $0x55c] sm:$0xf]
      %v1679 = vld [vmem:[#allocation9 + $0x560] sm:$0xf]
      %v1680 = vld [vmem:[#allocation9 + $0x564] sm:$0xf]
      %v1681 = vld [vmem:[#allocation9 + $0x568] sm:$0xf]
      %v1682 = vld [vmem:[#allocation9 + $0x56c] sm:$0xf]
      %v1683 = vld [vmem:[#allocation9 + $0x570] sm:$0xf]
      %v1684 = vld [vmem:[#allocation9 + $0x574] sm:$0xf]
      %v1685 = vld [vmem:[#allocation9 + $0x578] sm:$0xf]
      %v1686 = vld [vmem:[#allocation9 + $0x57c] sm:$0xf]
      %v1687 = vld [vmem:[#allocation9 + $0x580] sm:$0xf]
      %v1688 = vld [vmem:[#allocation9 + $0x584] sm:$0xf]
      %v1689 = vld [vmem:[#allocation9 + $0x588] sm:$0xf]
      %v1690 = vld [vmem:[#allocation9 + $0x58c] sm:$0xf]
      %v1691 = vld [vmem:[#allocation9 + $0x590] sm:$0xf]
      %v1692 = vld [vmem:[#allocation9 + $0x594] sm:$0xf]
      %v1693 = vld [vmem:[#allocation9 + $0x598] sm:$0xf]
      %v1694 = vld [vmem:[#allocation9 + $0x59c] sm:$0xf]
      %v1695 = vld [vmem:[#allocation9 + $0x5a0] sm:$0xf]
      %v1696 = vld [vmem:[#allocation9 + $0x5a4] sm:$0xf]
      %v1697 = vld [vmem:[#allocation9 + $0x5a8] sm:$0xf]
      %v1698 = vld [vmem:[#allocation9 + $0x5ac] sm:$0xf]
      %v1699 = vld [vmem:[#allocation9 + $0x5b0] sm:$0xf]
      %v1700 = vld [vmem:[#allocation9 + $0x5b4] sm:$0xf]
      %v1701 = vld [vmem:[#allocation9 + $0x5b8] sm:$0xf]
      %v1702 = vld [vmem:[#allocation9 + $0x5bc] sm:$0xf]
      %v1703 = vld [vmem:[#allocation9 + $0x5c0] sm:$0xf]
      %v1704 = vld [vmem:[#allocation9 + $0x5c4] sm:$0xf]
      %v1705 = vld [vmem:[#allocation9 + $0x5c8] sm:$0xf]
      %v1706 = vld [vmem:[#allocation9 + $0x5cc] sm:$0xf]
      %v1707 = vld [vmem:[#allocation9 + $0x5d0] sm:$0xf]
      %v1708 = vld [vmem:[#allocation9 + $0x5d4] sm:$0xf]
      %v1709 = vld [vmem:[#allocation9 + $0x5d8] sm:$0xf]
      %v1710 = vld [vmem:[#allocation9 + $0x5dc] sm:$0xf]
      %v1711 = vld [vmem:[#allocation9 + $0x5e0] sm:$0xf]
      %v1712 = vld [vmem:[#allocation9 + $0x5e4] sm:$0xf]
      %v1713 = vld [vmem:[#allocation9 + $0x5e8] sm:$0xf]
      %v1714 = vld [vmem:[#allocation9 + $0x5ec] sm:$0xf]
      %v1715 = vld [vmem:[#allocation9 + $0x5f0] sm:$0xf]
      %v1716 = vld [vmem:[#allocation9 + $0x5f4] sm:$0xf]
      %v1717 = vld [vmem:[#allocation9 + $0x5f8] sm:$0xf]
      %v1718 = vld [vmem:[#allocation9 + $0x5fc] sm:$0xf]
      %v1719 = vld [vmem:[%s4] sm:$0x1]
      %v1721 = vlaneseq
      %v1722 = vshrl.u32 %v1721, 7
      %v1723 = vsub.s32 0, %v1722
      %v1724 = vrot.slane %v1719, %v1723
      %v2110 = vunpack.c.l.b16 %v1335
      %v2111 = vunpack.c.l.b16 %v1336
      %v2112 = vunpack.c.l.b16 %v1337
      %v2113 = vunpack.c.l.b16 %v1338
      %v2114 = vunpack.c.l.b16 %v1339
      %v2115 = vunpack.c.l.b16 %v1340
      %v2116 = vunpack.c.l.b16 %v1341
      %v2117 = vunpack.c.l.b16 %v1342
      %v2118 = vunpack.c.l.b16 %v1343
      %v2119 = vunpack.c.l.b16 %v1344
      %v2120 = vunpack.c.l.b16 %v1345
      %v2121 = vunpack.c.l.b16 %v1346
      %v2122 = vunpack.c.l.b16 %v1347
      %v2123 = vunpack.c.l.b16 %v1348
      %v2124 = vunpack.c.l.b16 %v1349
      %v2125 = vunpack.c.l.b16 %v1350
      %v2126 = vunpack.c.l.b16 %v1351
      %v2127 = vunpack.c.l.b16 %v1352
      %v2128 = vunpack.c.l.b16 %v1353
      %v2129 = vunpack.c.l.b16 %v1354
      %v2130 = vunpack.c.l.b16 %v1355
      %v2131 = vunpack.c.l.b16 %v1356
      %v2132 = vunpack.c.l.b16 %v1357
      %v2133 = vunpack.c.l.b16 %v1358
      %v2134 = vunpack.c.l.b16 %v1359
      %v2135 = vunpack.c.l.b16 %v1360
      %v2136 = vunpack.c.l.b16 %v1361
      %v2137 = vunpack.c.l.b16 %v1362
      %v2138 = vunpack.c.l.b16 %v1363
      %v2139 = vunpack.c.l.b16 %v1364
      %v2140 = vunpack.c.l.b16 %v1365
      %v2141 = vunpack.c.l.b16 %v1366
      %v2142 = vunpack.c.l.b16 %v1367
      %v2143 = vunpack.c.l.b16 %v1368
      %v2144 = vunpack.c.l.b16 %v1369
      %v2145 = vunpack.c.l.b16 %v1370
      %v2146 = vunpack.c.l.b16 %v1371
      %v2147 = vunpack.c.l.b16 %v1372
      %v2148 = vunpack.c.l.b16 %v1373
      %v2149 = vunpack.c.l.b16 %v1374
      %v2150 = vunpack.c.l.b16 %v1375
      %v2151 = vunpack.c.l.b16 %v1376
      %v2152 = vunpack.c.l.b16 %v1377
      %v2153 = vunpack.c.l.b16 %v1378
      %v2154 = vunpack.c.l.b16 %v1379
      %v2155 = vunpack.c.l.b16 %v1380
      %v2156 = vunpack.c.l.b16 %v1381
      %v2157 = vunpack.c.l.b16 %v1382
      %v2158 = vunpack.c.l.b16 %v1383
      %v2159 = vunpack.c.l.b16 %v1384
      %v2160 = vunpack.c.l.b16 %v1385
      %v2161 = vunpack.c.l.b16 %v1386
      %v2162 = vunpack.c.l.b16 %v1387
      %v2163 = vunpack.c.l.b16 %v1388
      %v2164 = vunpack.c.l.b16 %v1389
      %v2165 = vunpack.c.l.b16 %v1390
      %v2166 = vunpack.c.l.b16 %v1391
      %v2167 = vunpack.c.l.b16 %v1392
      %v2168 = vunpack.c.l.b16 %v1393
      %v2169 = vunpack.c.l.b16 %v1394
      %v2170 = vunpack.c.l.b16 %v1395
      %v2171 = vunpack.c.l.b16 %v1396
      %v2172 = vunpack.c.l.b16 %v1397
      %v2173 = vunpack.c.l.b16 %v1398
      %v2174 = vunpack.c.l.b16 %v1399
      %v2175 = vunpack.c.l.b16 %v1400
      %v2176 = vunpack.c.l.b16 %v1401
      %v2177 = vunpack.c.l.b16 %v1402
      %v2178 = vunpack.c.l.b16 %v1403
      %v2179 = vunpack.c.l.b16 %v1404
      %v2180 = vunpack.c.l.b16 %v1405
      %v2181 = vunpack.c.l.b16 %v1406
      %v2182 = vunpack.c.l.b16 %v1407
      %v2183 = vunpack.c.l.b16 %v1408
      %v2184 = vunpack.c.l.b16 %v1409
      %v2185 = vunpack.c.l.b16 %v1410
      %v2186 = vunpack.c.l.b16 %v1411
      %v2187 = vunpack.c.l.b16 %v1412
      %v2188 = vunpack.c.l.b16 %v1413
      %v2189 = vunpack.c.l.b16 %v1414
      %v2190 = vunpack.c.l.b16 %v1415
      %v2191 = vunpack.c.l.b16 %v1416
      %v2192 = vunpack.c.l.b16 %v1417
      %v2193 = vunpack.c.l.b16 %v1418
      %v2194 = vunpack.c.l.b16 %v1419
      %v2195 = vunpack.c.l.b16 %v1420
      %v2196 = vunpack.c.l.b16 %v1421
      %v2197 = vunpack.c.l.b16 %v1422
      %v2198 = vunpack.c.l.b16 %v1423
      %v2199 = vunpack.c.l.b16 %v1424
      %v2200 = vunpack.c.l.b16 %v1425
      %v2201 = vunpack.c.l.b16 %v1426
      %v2202 = vunpack.c.l.b16 %v1427
      %v2203 = vunpack.c.l.b16 %v1428
      %v2204 = vunpack.c.l.b16 %v1429
      %v2205 = vunpack.c.l.b16 %v1430
      %v2206 = vunpack.c.l.b16 %v1431
      %v2207 = vunpack.c.l.b16 %v1432
      %v2208 = vunpack.c.l.b16 %v1433
      %v2209 = vunpack.c.l.b16 %v1434
      %v2210 = vunpack.c.l.b16 %v1435
      %v2211 = vunpack.c.l.b16 %v1436
      %v2212 = vunpack.c.l.b16 %v1437
      %v2213 = vunpack.c.l.b16 %v1438
      %v2214 = vunpack.c.l.b16 %v1439
      %v2215 = vunpack.c.l.b16 %v1440
      %v2216 = vunpack.c.l.b16 %v1441
      %v2217 = vunpack.c.l.b16 %v1442
      %v2218 = vunpack.c.l.b16 %v1443
      %v2219 = vunpack.c.l.b16 %v1444
      %v2220 = vunpack.c.l.b16 %v1445
      %v2221 = vunpack.c.l.b16 %v1446
      %v2222 = vunpack.c.l.b16 %v1447
      %v2223 = vunpack.c.l.b16 %v1448
      %v2224 = vunpack.c.l.b16 %v1449
      %v2225 = vunpack.c.l.b16 %v1450
      %v2226 = vunpack.c.l.b16 %v1451
      %v2227 = vunpack.c.l.b16 %v1452
      %v2228 = vunpack.c.l.b16 %v1453
      %v2229 = vunpack.c.l.b16 %v1454
      %v2230 = vunpack.c.l.b16 %v1455
      %v2231 = vunpack.c.l.b16 %v1456
      %v2232 = vunpack.c.l.b16 %v1457
      %v2233 = vunpack.c.l.b16 %v1458
      %v2234 = vunpack.c.l.b16 %v1459
      %v2235 = vunpack.c.l.b16 %v1460
      %v2236 = vunpack.c.l.b16 %v1461
      %v2237 = vunpack.c.l.b16 %v1462
      %v2238 = vunpack.c.l.b16 %v1463
      %v2239 = vunpack.c.l.b16 %v1464
      %v2240 = vunpack.c.l.b16 %v1465
      %v2241 = vunpack.c.l.b16 %v1466
      %v2242 = vunpack.c.l.b16 %v1467
      %v2243 = vunpack.c.l.b16 %v1468
      %v2244 = vunpack.c.l.b16 %v1469
      %v2245 = vunpack.c.l.b16 %v1470
      %v2246 = vunpack.c.l.b16 %v1471
      %v2247 = vunpack.c.l.b16 %v1472
      %v2248 = vunpack.c.l.b16 %v1473
      %v2249 = vunpack.c.l.b16 %v1474
      %v2250 = vunpack.c.l.b16 %v1475
      %v2251 = vunpack.c.l.b16 %v1476
      %v2252 = vunpack.c.l.b16 %v1477
      %v2253 = vunpack.c.l.b16 %v1478
      %v2254 = vunpack.c.l.b16 %v1479
      %v2255 = vunpack.c.l.b16 %v1480
      %v2256 = vunpack.c.l.b16 %v1481
      %v2257 = vunpack.c.l.b16 %v1482
      %v2258 = vunpack.c.l.b16 %v1483
      %v2259 = vunpack.c.l.b16 %v1484
      %v2260 = vunpack.c.l.b16 %v1485
      %v2261 = vunpack.c.l.b16 %v1486
      %v2262 = vunpack.c.l.b16 %v1487
      %v2263 = vunpack.c.l.b16 %v1488
      %v2264 = vunpack.c.l.b16 %v1489
      %v2265 = vunpack.c.l.b16 %v1490
      %v2266 = vunpack.c.l.b16 %v1491
      %v2267 = vunpack.c.l.b16 %v1492
      %v2268 = vunpack.c.l.b16 %v1493
      %v2269 = vunpack.c.l.b16 %v1494
      %v2270 = vunpack.c.l.b16 %v1495
      %v2271 = vunpack.c.l.b16 %v1496
      %v2272 = vunpack.c.l.b16 %v1497
      %v2273 = vunpack.c.l.b16 %v1498
      %v2274 = vunpack.c.l.b16 %v1499
      %v2275 = vunpack.c.l.b16 %v1500
      %v2276 = vunpack.c.l.b16 %v1501
      %v2277 = vunpack.c.l.b16 %v1502
      %v2278 = vunpack.c.l.b16 %v1503
      %v2279 = vunpack.c.l.b16 %v1504
      %v2280 = vunpack.c.l.b16 %v1505
      %v2281 = vunpack.c.l.b16 %v1506
      %v2282 = vunpack.c.l.b16 %v1507
      %v2283 = vunpack.c.l.b16 %v1508
      %v2284 = vunpack.c.l.b16 %v1509
      %v2285 = vunpack.c.l.b16 %v1510
      %v2286 = vunpack.c.l.b16 %v1511
      %v2287 = vunpack.c.l.b16 %v1512
      %v2288 = vunpack.c.l.b16 %v1513
      %v2289 = vunpack.c.l.b16 %v1514
      %v2290 = vunpack.c.l.b16 %v1515
      %v2291 = vunpack.c.l.b16 %v1516
      %v2292 = vunpack.c.l.b16 %v1517
      %v2293 = vunpack.c.l.b16 %v1518
      %v2294 = vunpack.c.l.b16 %v1519
      %v2295 = vunpack.c.l.b16 %v1520
      %v2296 = vunpack.c.l.b16 %v1521
      %v2297 = vunpack.c.l.b16 %v1522
      %v2298 = vunpack.c.l.b16 %v1523
      %v2299 = vunpack.c.l.b16 %v1524
      %v2300 = vunpack.c.l.b16 %v1525
      %v2301 = vunpack.c.l.b16 %v1526
      %v2302 = vunpack.c.l.b16 %v1527
      %v2303 = vunpack.c.l.b16 %v1528
      %v2304 = vunpack.c.l.b16 %v1529
      %v2305 = vunpack.c.l.b16 %v1530
      %v2306 = vunpack.c.l.b16 %v1531
      %v2307 = vunpack.c.l.b16 %v1532
      %v2308 = vunpack.c.l.b16 %v1533
      %v2309 = vunpack.c.l.b16 %v1534
      %v2310 = vunpack.c.l.b16 %v1535
      %v2311 = vunpack.c.l.b16 %v1536
      %v2312 = vunpack.c.l.b16 %v1537
      %v2313 = vunpack.c.l.b16 %v1538
      %v2314 = vunpack.c.l.b16 %v1539
      %v2315 = vunpack.c.l.b16 %v1540
      %v2316 = vunpack.c.l.b16 %v1541
      %v2317 = vunpack.c.l.b16 %v1542
      %v2318 = vunpack.c.l.b16 %v1543
      %v2319 = vunpack.c.l.b16 %v1544
      %v2320 = vunpack.c.l.b16 %v1545
      %v2321 = vunpack.c.l.b16 %v1546
      %v2322 = vunpack.c.l.b16 %v1547
      %v2323 = vunpack.c.l.b16 %v1548
      %v2324 = vunpack.c.l.b16 %v1549
      %v2325 = vunpack.c.l.b16 %v1550
      %v2326 = vunpack.c.l.b16 %v1551
      %v2327 = vunpack.c.l.b16 %v1552
      %v2328 = vunpack.c.l.b16 %v1553
      %v2329 = vunpack.c.l.b16 %v1554
      %v2330 = vunpack.c.l.b16 %v1555
      %v2331 = vunpack.c.l.b16 %v1556
      %v2332 = vunpack.c.l.b16 %v1557
      %v2333 = vunpack.c.l.b16 %v1558
      %v2334 = vunpack.c.l.b16 %v1559
      %v2335 = vunpack.c.l.b16 %v1560
      %v2336 = vunpack.c.l.b16 %v1561
      %v2337 = vunpack.c.l.b16 %v1562
      %v2338 = vunpack.c.l.b16 %v1563
      %v2339 = vunpack.c.l.b16 %v1564
      %v2340 = vunpack.c.l.b16 %v1565
      %v2341 = vunpack.c.l.b16 %v1566
      %v2342 = vunpack.c.l.b16 %v1567
      %v2343 = vunpack.c.l.b16 %v1568
      %v2344 = vunpack.c.l.b16 %v1569
      %v2345 = vunpack.c.l.b16 %v1570
      %v2346 = vunpack.c.l.b16 %v1571
      %v2347 = vunpack.c.l.b16 %v1572
      %v2348 = vunpack.c.l.b16 %v1573
      %v2349 = vunpack.c.l.b16 %v1574
      %v2350 = vunpack.c.l.b16 %v1575
      %v2351 = vunpack.c.l.b16 %v1576
      %v2352 = vunpack.c.l.b16 %v1577
      %v2353 = vunpack.c.l.b16 %v1578
      %v2354 = vunpack.c.l.b16 %v1579
      %v2355 = vunpack.c.l.b16 %v1580
      %v2356 = vunpack.c.l.b16 %v1581
      %v2357 = vunpack.c.l.b16 %v1582
      %v2358 = vunpack.c.l.b16 %v1583
      %v2359 = vunpack.c.l.b16 %v1584
      %v2360 = vunpack.c.l.b16 %v1585
      %v2361 = vunpack.c.l.b16 %v1586
      %v2362 = vunpack.c.l.b16 %v1587
      %v2363 = vunpack.c.l.b16 %v1588
      %v2364 = vunpack.c.l.b16 %v1589
      %v2365 = vunpack.c.l.b16 %v1590
      %v2366 = vunpack.c.l.b16 %v1591
      %v2367 = vunpack.c.l.b16 %v1592
      %v2368 = vunpack.c.l.b16 %v1593
      %v2369 = vunpack.c.l.b16 %v1594
      %v2370 = vunpack.c.l.b16 %v1595
      %v2371 = vunpack.c.l.b16 %v1596
      %v2372 = vunpack.c.l.b16 %v1597
      %v2373 = vunpack.c.l.b16 %v1598
      %v2374 = vunpack.c.l.b16 %v1599
      %v2375 = vunpack.c.l.b16 %v1600
      %v2376 = vunpack.c.l.b16 %v1601
      %v2377 = vunpack.c.l.b16 %v1602
      %v2378 = vunpack.c.l.b16 %v1603
      %v2379 = vunpack.c.l.b16 %v1604
      %v2380 = vunpack.c.l.b16 %v1605
      %v2381 = vunpack.c.l.b16 %v1606
      %v2382 = vunpack.c.l.b16 %v1607
      %v2383 = vunpack.c.l.b16 %v1608
      %v2384 = vunpack.c.l.b16 %v1609
      %v2385 = vunpack.c.l.b16 %v1610
      %v2386 = vunpack.c.l.b16 %v1611
      %v2387 = vunpack.c.l.b16 %v1612
      %v2388 = vunpack.c.l.b16 %v1613
      %v2389 = vunpack.c.l.b16 %v1614
      %v2390 = vunpack.c.l.b16 %v1615
      %v2391 = vunpack.c.l.b16 %v1616
      %v2392 = vunpack.c.l.b16 %v1617
      %v2393 = vunpack.c.l.b16 %v1618
      %v2394 = vunpack.c.l.b16 %v1619
      %v2395 = vunpack.c.l.b16 %v1620
      %v2396 = vunpack.c.l.b16 %v1621
      %v2397 = vunpack.c.l.b16 %v1622
      %v2398 = vunpack.c.l.b16 %v1623
      %v2399 = vunpack.c.l.b16 %v1624
      %v2400 = vunpack.c.l.b16 %v1625
      %v2401 = vunpack.c.l.b16 %v1626
      %v2402 = vunpack.c.l.b16 %v1627
      %v2403 = vunpack.c.l.b16 %v1628
      %v2404 = vunpack.c.l.b16 %v1629
      %v2405 = vunpack.c.l.b16 %v1630
      %v2406 = vunpack.c.l.b16 %v1631
      %v2407 = vunpack.c.l.b16 %v1632
      %v2408 = vunpack.c.l.b16 %v1633
      %v2409 = vunpack.c.l.b16 %v1634
      %v2410 = vunpack.c.l.b16 %v1635
      %v2411 = vunpack.c.l.b16 %v1636
      %v2412 = vunpack.c.l.b16 %v1637
      %v2413 = vunpack.c.l.b16 %v1638
      %v2414 = vunpack.c.l.b16 %v1639
      %v2415 = vunpack.c.l.b16 %v1640
      %v2416 = vunpack.c.l.b16 %v1641
      %v2417 = vunpack.c.l.b16 %v1642
      %v2418 = vunpack.c.l.b16 %v1643
      %v2419 = vunpack.c.l.b16 %v1644
      %v2420 = vunpack.c.l.b16 %v1645
      %v2421 = vunpack.c.l.b16 %v1646
      %v2422 = vunpack.c.l.b16 %v1647
      %v2423 = vunpack.c.l.b16 %v1648
      %v2424 = vunpack.c.l.b16 %v1649
      %v2425 = vunpack.c.l.b16 %v1650
      %v2426 = vunpack.c.l.b16 %v1651
      %v2427 = vunpack.c.l.b16 %v1652
      %v2428 = vunpack.c.l.b16 %v1653
      %v2429 = vunpack.c.l.b16 %v1654
      %v2430 = vunpack.c.l.b16 %v1655
      %v2431 = vunpack.c.l.b16 %v1656
      %v2432 = vunpack.c.l.b16 %v1657
      %v2433 = vunpack.c.l.b16 %v1658
      %v2434 = vunpack.c.l.b16 %v1659
      %v2435 = vunpack.c.l.b16 %v1660
      %v2436 = vunpack.c.l.b16 %v1661
      %v2437 = vunpack.c.l.b16 %v1662
      %v2438 = vunpack.c.l.b16 %v1663
      %v2439 = vunpack.c.l.b16 %v1664
      %v2440 = vunpack.c.l.b16 %v1665
      %v2441 = vunpack.c.l.b16 %v1666
      %v2442 = vunpack.c.l.b16 %v1667
      %v2443 = vunpack.c.l.b16 %v1668
      %v2444 = vunpack.c.l.b16 %v1669
      %v2445 = vunpack.c.l.b16 %v1670
      %v2446 = vunpack.c.l.b16 %v1671
      %v2447 = vunpack.c.l.b16 %v1672
      %v2448 = vunpack.c.l.b16 %v1673
      %v2449 = vunpack.c.l.b16 %v1674
      %v2450 = vunpack.c.l.b16 %v1675
      %v2451 = vunpack.c.l.b16 %v1676
      %v2452 = vunpack.c.l.b16 %v1677
      %v2453 = vunpack.c.l.b16 %v1678
      %v2454 = vunpack.c.l.b16 %v1679
      %v2455 = vunpack.c.l.b16 %v1680
      %v2456 = vunpack.c.l.b16 %v1681
      %v2457 = vunpack.c.l.b16 %v1682
      %v2458 = vunpack.c.l.b16 %v1683
      %v2459 = vunpack.c.l.b16 %v1684
      %v2460 = vunpack.c.l.b16 %v1685
      %v2461 = vunpack.c.l.b16 %v1686
      %v2462 = vunpack.c.l.b16 %v1687
      %v2463 = vunpack.c.l.b16 %v1688
      %v2464 = vunpack.c.l.b16 %v1689
      %v2465 = vunpack.c.l.b16 %v1690
      %v2466 = vunpack.c.l.b16 %v1691
      %v2467 = vunpack.c.l.b16 %v1692
      %v2468 = vunpack.c.l.b16 %v1693
      %v2469 = vunpack.c.l.b16 %v1694
      %v2470 = vunpack.c.l.b16 %v1695
      %v2471 = vunpack.c.l.b16 %v1696
      %v2472 = vunpack.c.l.b16 %v1697
      %v2473 = vunpack.c.l.b16 %v1698
      %v2474 = vunpack.c.l.b16 %v1699
      %v2475 = vunpack.c.l.b16 %v1700
      %v2476 = vunpack.c.l.b16 %v1701
      %v2477 = vunpack.c.l.b16 %v1702
      %v2478 = vunpack.c.l.b16 %v1703
      %v2479 = vunpack.c.l.b16 %v1704
      %v2480 = vunpack.c.l.b16 %v1705
      %v2481 = vunpack.c.l.b16 %v1706
      %v2482 = vunpack.c.l.b16 %v1707
      %v2483 = vunpack.c.l.b16 %v1708
      %v2484 = vunpack.c.l.b16 %v1709
      %v2485 = vunpack.c.l.b16 %v1710
      %v2486 = vunpack.c.l.b16 %v1711
      %v2487 = vunpack.c.l.b16 %v1712
      %v2488 = vunpack.c.l.b16 %v1713
      %v2489 = vunpack.c.l.b16 %v1714
      %v2490 = vunpack.c.l.b16 %v1715
      %v2491 = vunpack.c.l.b16 %v1716
      %v2492 = vunpack.c.l.b16 %v1717
      %v2493 = vunpack.c.l.b16 %v1718
      %v2494 = vpack.c.b16 %v2111, %v2110
      %v2495 = vpack.c.b16 %v2113, %v2112
      %v2496 = vpack.c.b16 %v2115, %v2114
      %v2497 = vpack.c.b16 %v2117, %v2116
      %v2498 = vpack.c.b16 %v2119, %v2118
      %v2499 = vpack.c.b16 %v2121, %v2120
      %v2500 = vpack.c.b16 %v2123, %v2122
      %v2501 = vpack.c.b16 %v2125, %v2124
      %v2502 = vpack.c.b16 %v2127, %v2126
      %v2503 = vpack.c.b16 %v2129, %v2128
      %v2504 = vpack.c.b16 %v2131, %v2130
      %v2505 = vpack.c.b16 %v2133, %v2132
      %v2506 = vpack.c.b16 %v2135, %v2134
      %v2507 = vpack.c.b16 %v2137, %v2136
      %v2508 = vpack.c.b16 %v2139, %v2138
      %v2509 = vpack.c.b16 %v2141, %v2140
      %v2510 = vpack.c.b16 %v2143, %v2142
      %v2511 = vpack.c.b16 %v2145, %v2144
      %v2512 = vpack.c.b16 %v2147, %v2146
      %v2513 = vpack.c.b16 %v2149, %v2148
      %v2514 = vpack.c.b16 %v2151, %v2150
      %v2515 = vpack.c.b16 %v2153, %v2152
      %v2516 = vpack.c.b16 %v2155, %v2154
      %v2517 = vpack.c.b16 %v2157, %v2156
      %v2518 = vpack.c.b16 %v2159, %v2158
      %v2519 = vpack.c.b16 %v2161, %v2160
      %v2520 = vpack.c.b16 %v2163, %v2162
      %v2521 = vpack.c.b16 %v2165, %v2164
      %v2522 = vpack.c.b16 %v2167, %v2166
      %v2523 = vpack.c.b16 %v2169, %v2168
      %v2524 = vpack.c.b16 %v2171, %v2170
      %v2525 = vpack.c.b16 %v2173, %v2172
      %v2526 = vpack.c.b16 %v2175, %v2174
      %v2527 = vpack.c.b16 %v2177, %v2176
      %v2528 = vpack.c.b16 %v2179, %v2178
      %v2529 = vpack.c.b16 %v2181, %v2180
      %v2530 = vpack.c.b16 %v2183, %v2182
      %v2531 = vpack.c.b16 %v2185, %v2184
      %v2532 = vpack.c.b16 %v2187, %v2186
      %v2533 = vpack.c.b16 %v2189, %v2188
      %v2534 = vpack.c.b16 %v2191, %v2190
      %v2535 = vpack.c.b16 %v2193, %v2192
      %v2536 = vpack.c.b16 %v2195, %v2194
      %v2537 = vpack.c.b16 %v2197, %v2196
      %v2538 = vpack.c.b16 %v2199, %v2198
      %v2539 = vpack.c.b16 %v2201, %v2200
      %v2540 = vpack.c.b16 %v2203, %v2202
      %v2541 = vpack.c.b16 %v2205, %v2204
      %v2542 = vpack.c.b16 %v2207, %v2206
      %v2543 = vpack.c.b16 %v2209, %v2208
      %v2544 = vpack.c.b16 %v2211, %v2210
      %v2545 = vpack.c.b16 %v2213, %v2212
      %v2546 = vpack.c.b16 %v2215, %v2214
      %v2547 = vpack.c.b16 %v2217, %v2216
      %v2548 = vpack.c.b16 %v2219, %v2218
      %v2549 = vpack.c.b16 %v2221, %v2220
      %v2550 = vpack.c.b16 %v2223, %v2222
      %v2551 = vpack.c.b16 %v2225, %v2224
      %v2552 = vpack.c.b16 %v2227, %v2226
      %v2553 = vpack.c.b16 %v2229, %v2228
      %v2554 = vpack.c.b16 %v2231, %v2230
      %v2555 = vpack.c.b16 %v2233, %v2232
      %v2556 = vpack.c.b16 %v2235, %v2234
      %v2557 = vpack.c.b16 %v2237, %v2236
      %v2558 = vpack.c.b16 %v2239, %v2238
      %v2559 = vpack.c.b16 %v2241, %v2240
      %v2560 = vpack.c.b16 %v2243, %v2242
      %v2561 = vpack.c.b16 %v2245, %v2244
      %v2562 = vpack.c.b16 %v2247, %v2246
      %v2563 = vpack.c.b16 %v2249, %v2248
      %v2564 = vpack.c.b16 %v2251, %v2250
      %v2565 = vpack.c.b16 %v2253, %v2252
      %v2566 = vpack.c.b16 %v2255, %v2254
      %v2567 = vpack.c.b16 %v2257, %v2256
      %v2568 = vpack.c.b16 %v2259, %v2258
      %v2569 = vpack.c.b16 %v2261, %v2260
      %v2570 = vpack.c.b16 %v2263, %v2262
      %v2571 = vpack.c.b16 %v2265, %v2264
      %v2572 = vpack.c.b16 %v2267, %v2266
      %v2573 = vpack.c.b16 %v2269, %v2268
      %v2574 = vpack.c.b16 %v2271, %v2270
      %v2575 = vpack.c.b16 %v2273, %v2272
      %v2576 = vpack.c.b16 %v2275, %v2274
      %v2577 = vpack.c.b16 %v2277, %v2276
      %v2578 = vpack.c.b16 %v2279, %v2278
      %v2579 = vpack.c.b16 %v2281, %v2280
      %v2580 = vpack.c.b16 %v2283, %v2282
      %v2581 = vpack.c.b16 %v2285, %v2284
      %v2582 = vpack.c.b16 %v2287, %v2286
      %v2583 = vpack.c.b16 %v2289, %v2288
      %v2584 = vpack.c.b16 %v2291, %v2290
      %v2585 = vpack.c.b16 %v2293, %v2292
      %v2586 = vpack.c.b16 %v2295, %v2294
      %v2587 = vpack.c.b16 %v2297, %v2296
      %v2588 = vpack.c.b16 %v2299, %v2298
      %v2589 = vpack.c.b16 %v2301, %v2300
      %v2590 = vpack.c.b16 %v2303, %v2302
      %v2591 = vpack.c.b16 %v2305, %v2304
      %v2592 = vpack.c.b16 %v2307, %v2306
      %v2593 = vpack.c.b16 %v2309, %v2308
      %v2594 = vpack.c.b16 %v2311, %v2310
      %v2595 = vpack.c.b16 %v2313, %v2312
      %v2596 = vpack.c.b16 %v2315, %v2314
      %v2597 = vpack.c.b16 %v2317, %v2316
      %v2598 = vpack.c.b16 %v2319, %v2318
      %v2599 = vpack.c.b16 %v2321, %v2320
      %v2600 = vpack.c.b16 %v2323, %v2322
      %v2601 = vpack.c.b16 %v2325, %v2324
      %v2602 = vpack.c.b16 %v2327, %v2326
      %v2603 = vpack.c.b16 %v2329, %v2328
      %v2604 = vpack.c.b16 %v2331, %v2330
      %v2605 = vpack.c.b16 %v2333, %v2332
      %v2606 = vpack.c.b16 %v2335, %v2334
      %v2607 = vpack.c.b16 %v2337, %v2336
      %v2608 = vpack.c.b16 %v2339, %v2338
      %v2609 = vpack.c.b16 %v2341, %v2340
      %v2610 = vpack.c.b16 %v2343, %v2342
      %v2611 = vpack.c.b16 %v2345, %v2344
      %v2612 = vpack.c.b16 %v2347, %v2346
      %v2613 = vpack.c.b16 %v2349, %v2348
      %v2614 = vpack.c.b16 %v2351, %v2350
      %v2615 = vpack.c.b16 %v2353, %v2352
      %v2616 = vpack.c.b16 %v2355, %v2354
      %v2617 = vpack.c.b16 %v2357, %v2356
      %v2618 = vpack.c.b16 %v2359, %v2358
      %v2619 = vpack.c.b16 %v2361, %v2360
      %v2620 = vpack.c.b16 %v2363, %v2362
      %v2621 = vpack.c.b16 %v2365, %v2364
      %v2622 = vpack.c.b16 %v2367, %v2366
      %v2623 = vpack.c.b16 %v2369, %v2368
      %v2624 = vpack.c.b16 %v2371, %v2370
      %v2625 = vpack.c.b16 %v2373, %v2372
      %v2626 = vpack.c.b16 %v2375, %v2374
      %v2627 = vpack.c.b16 %v2377, %v2376
      %v2628 = vpack.c.b16 %v2379, %v2378
      %v2629 = vpack.c.b16 %v2381, %v2380
      %v2630 = vpack.c.b16 %v2383, %v2382
      %v2631 = vpack.c.b16 %v2385, %v2384
      %v2632 = vpack.c.b16 %v2387, %v2386
      %v2633 = vpack.c.b16 %v2389, %v2388
      %v2634 = vpack.c.b16 %v2391, %v2390
      %v2635 = vpack.c.b16 %v2393, %v2392
      %v2636 = vpack.c.b16 %v2395, %v2394
      %v2637 = vpack.c.b16 %v2397, %v2396
      %v2638 = vpack.c.b16 %v2399, %v2398
      %v2639 = vpack.c.b16 %v2401, %v2400
      %v2640 = vpack.c.b16 %v2403, %v2402
      %v2641 = vpack.c.b16 %v2405, %v2404
      %v2642 = vpack.c.b16 %v2407, %v2406
      %v2643 = vpack.c.b16 %v2409, %v2408
      %v2644 = vpack.c.b16 %v2411, %v2410
      %v2645 = vpack.c.b16 %v2413, %v2412
      %v2646 = vpack.c.b16 %v2415, %v2414
      %v2647 = vpack.c.b16 %v2417, %v2416
      %v2648 = vpack.c.b16 %v2419, %v2418
      %v2649 = vpack.c.b16 %v2421, %v2420
      %v2650 = vpack.c.b16 %v2423, %v2422
      %v2651 = vpack.c.b16 %v2425, %v2424
      %v2652 = vpack.c.b16 %v2427, %v2426
      %v2653 = vpack.c.b16 %v2429, %v2428
      %v2654 = vpack.c.b16 %v2431, %v2430
      %v2655 = vpack.c.b16 %v2433, %v2432
      %v2656 = vpack.c.b16 %v2435, %v2434
      %v2657 = vpack.c.b16 %v2437, %v2436
      %v2658 = vpack.c.b16 %v2439, %v2438
      %v2659 = vpack.c.b16 %v2441, %v2440
      %v2660 = vpack.c.b16 %v2443, %v2442
      %v2661 = vpack.c.b16 %v2445, %v2444
      %v2662 = vpack.c.b16 %v2447, %v2446
      %v2663 = vpack.c.b16 %v2449, %v2448
      %v2664 = vpack.c.b16 %v2451, %v2450
      %v2665 = vpack.c.b16 %v2453, %v2452
      %v2666 = vpack.c.b16 %v2455, %v2454
      %v2667 = vpack.c.b16 %v2457, %v2456
      %v2668 = vpack.c.b16 %v2459, %v2458
      %v2669 = vpack.c.b16 %v2461, %v2460
      %v2670 = vpack.c.b16 %v2463, %v2462
      %v2671 = vpack.c.b16 %v2465, %v2464
      %v2672 = vpack.c.b16 %v2467, %v2466
      %v2673 = vpack.c.b16 %v2469, %v2468
      %v2674 = vpack.c.b16 %v2471, %v2470
      %v2675 = vpack.c.b16 %v2473, %v2472
      %v2676 = vpack.c.b16 %v2475, %v2474
      %v2677 = vpack.c.b16 %v2477, %v2476
      %v2678 = vpack.c.b16 %v2479, %v2478
      %v2679 = vpack.c.b16 %v2481, %v2480
      %v2680 = vpack.c.b16 %v2483, %v2482
      %v2681 = vpack.c.b16 %v2485, %v2484
      %v2682 = vpack.c.b16 %v2487, %v2486
      %v2683 = vpack.c.b16 %v2489, %v2488
      %v2684 = vpack.c.b16 %v2491, %v2490
      %v2685 = vpack.c.b16 %v2493, %v2492
      %2878 = vmatprep.subr.bf16.mxu0 0
      %2879 = vmatpush1.bf16.msra.mxu0 %v2494
      %2880 = vmatprep.subr.bf16.mxu0 0
      %2881 = vmatpush1.bf16.msra.mxu0 %v2495
      %2882 = vmatprep.subr.bf16.mxu0 0
      %2883 = vmatpush1.bf16.msra.mxu0 %v2496
      %2884 = vmatprep.subr.bf16.mxu0 0
      %2885 = vmatpush1.bf16.msra.mxu0 %v2497
      %2886 = vmatprep.subr.bf16.mxu0 0
      %2887 = vmatpush1.bf16.msra.mxu0 %v2498
      %2888 = vmatprep.subr.bf16.mxu0 0
      %2889 = vmatpush1.bf16.msra.mxu0 %v2499
      %2890 = vmatprep.subr.bf16.mxu0 0
      %2891 = vmatpush1.bf16.msra.mxu0 %v2500
      %2892 = vmatprep.subr.bf16.mxu0 0
      %2893 = vmatpush1.bf16.msra.mxu0 %v2501
      %2894 = vmatprep.subr.bf16.mxu0 0
      %2895 = vmatpush1.bf16.msra.mxu0 %v2502
      %2896 = vmatprep.subr.bf16.mxu0 0
      %2897 = vmatpush1.bf16.msra.mxu0 %v2503
      %2898 = vmatprep.subr.bf16.mxu0 0
      %2899 = vmatpush1.bf16.msra.mxu0 %v2504
      %2900 = vmatprep.subr.bf16.mxu0 0
      %2901 = vmatpush1.bf16.msra.mxu0 %v2505
      %2902 = vmatprep.subr.bf16.mxu0 0
      %2903 = vmatpush1.bf16.msra.mxu0 %v2506
      %2904 = vmatprep.subr.bf16.mxu0 0
      %2905 = vmatpush1.bf16.msra.mxu0 %v2507
      %2906 = vmatprep.subr.bf16.mxu0 0
      %2907 = vmatpush1.bf16.msra.mxu0 %v2508
      %2908 = vmatprep.subr.bf16.mxu0 0
      %2909 = vmatpush1.bf16.msra.mxu0 %v2509
      %2910 = vmatprep.mubr.bf16.mxu0 %v1312
      %2911 = vmatmul.mubr.bf16.gmra.mrb[0].mxu0 %v1311
      %v2912 = vpop.f32.mrb[0].mxu0
      %v2913 = vadd.f32 %v1724, %v2912
      %v2914 = vpop.f32.mrb[0].mxu0
      %v2915 = vpop.f32.mrb[0].mxu0
      %v2916 = vadd.f32 %v1724, %v2915
      %v2917 = vpop.f32.mrb[0].mxu0
      %2918 = vdwg.mxu0
      %2919 = vmatprep.subr.bf16.mxu0 0
      %2920 = vmatpush1.bf16.msra.mxu0 %v2510
      %2921 = vmatprep.subr.bf16.mxu0 0
      %2922 = vmatpush1.bf16.msra.mxu0 %v2511
      %2923 = vmatprep.subr.bf16.mxu0 0
      %2924 = vmatpush1.bf16.msra.mxu0 %v2512
      %2925 = vmatprep.subr.bf16.mxu0 0
      %2926 = vmatpush1.bf16.msra.mxu0 %v2513
      %2927 = vmatprep.subr.bf16.mxu0 0
      %2928 = vmatpush1.bf16.msra.mxu0 %v2514
      %2929 = vmatprep.subr.bf16.mxu0 0
      %2930 = vmatpush1.bf16.msra.mxu0 %v2515
      %2931 = vmatprep.subr.bf16.mxu0 0
      %2932 = vmatpush1.bf16.msra.mxu0 %v2516
      %2933 = vmatprep.subr.bf16.mxu0 0
      %2934 = vmatpush1.bf16.msra.mxu0 %v2517
      %2935 = vmatprep.subr.bf16.mxu0 0
      %2936 = vmatpush1.bf16.msra.mxu0 %v2518
      %2937 = vmatprep.subr.bf16.mxu0 0
      %2938 = vmatpush1.bf16.msra.mxu0 %v2519
      %2939 = vmatprep.subr.bf16.mxu0 0
      %2940 = vmatpush1.bf16.msra.mxu0 %v2520
      %2941 = vmatprep.subr.bf16.mxu0 0
      %2942 = vmatpush1.bf16.msra.mxu0 %v2521
      %2943 = vmatprep.subr.bf16.mxu0 0
      %2944 = vmatpush1.bf16.msra.mxu0 %v2522
      %2945 = vmatprep.subr.bf16.mxu0 0
      %2946 = vmatpush1.bf16.msra.mxu0 %v2523
      %2947 = vmatprep.subr.bf16.mxu0 0
      %2948 = vmatpush1.bf16.msra.mxu0 %v2524
      %2949 = vmatprep.subr.bf16.mxu0 0
      %2950 = vmatpush1.bf16.msra.mxu0 %v2525
      %2951 = vmatprep.mubr.bf16.mxu0 %v1314
      %2952 = vmatmul.mubr.bf16.gmra.mrb[0].mxu0 %v1313
      %v2953 = vpop.f32.mrb[0].mxu0
      %v2954 = vadd.f32 %v2913, %v2953
      %v2955 = vpop.f32.mrb[0].mxu0
      %v2956 = vpop.f32.mrb[0].mxu0
      %v2957 = vadd.f32 %v2916, %v2956
      %v2958 = vpop.f32.mrb[0].mxu0
      %2959 = vdwg.mxu0
      %2960 = vmatprep.subr.bf16.mxu0 0
      %2961 = vmatpush1.bf16.msra.mxu0 %v2526
      %2962 = vmatprep.subr.bf16.mxu0 0
      %2963 = vmatpush1.bf16.msra.mxu0 %v2527
      %2964 = vmatprep.subr.bf16.mxu0 0
      %2965 = vmatpush1.bf16.msra.mxu0 %v2528
      %2966 = vmatprep.subr.bf16.mxu0 0
      %2967 = vmatpush1.bf16.msra.mxu0 %v2529
      %2968 = vmatprep.subr.bf16.mxu0 0
      %2969 = vmatpush1.bf16.msra.mxu0 %v2530
      %2970 = vmatprep.subr.bf16.mxu0 0
      %2971 = vmatpush1.bf16.msra.mxu0 %v2531
      %2972 = vmatprep.subr.bf16.mxu0 0
      %2973 = vmatpush1.bf16.msra.mxu0 %v2532
      %2974 = vmatprep.subr.bf16.mxu0 0
      %2975 = vmatpush1.bf16.msra.mxu0 %v2533
      %2976 = vmatprep.subr.bf16.mxu0 0
      %2977 = vmatpush1.bf16.msra.mxu0 %v2534
      %2978 = vmatprep.subr.bf16.mxu0 0
      %2979 = vmatpush1.bf16.msra.mxu0 %v2535
      %2980 = vmatprep.subr.bf16.mxu0 0
      %2981 = vmatpush1.bf16.msra.mxu0 %v2536
      %2982 = vmatprep.subr.bf16.mxu0 0
      %2983 = vmatpush1.bf16.msra.mxu0 %v2537
      %2984 = vmatprep.subr.bf16.mxu0 0
      %2985 = vmatpush1.bf16.msra.mxu0 %v2538
      %2986 = vmatprep.subr.bf16.mxu0 0
      %2987 = vmatpush1.bf16.msra.mxu0 %v2539
      %2988 = vmatprep.subr.bf16.mxu0 0
      %2989 = vmatpush1.bf16.msra.mxu0 %v2540
      %2990 = vmatprep.subr.bf16.mxu0 0
      %2991 = vmatpush1.bf16.msra.mxu0 %v2541
      %2992 = vmatprep.mubr.bf16.mxu0 %v1316
      %2993 = vmatmul.mubr.bf16.gmra.mrb[0].mxu0 %v1315
      %v2994 = vpop.f32.mrb[0].mxu0
      %v2995 = vadd.f32 %v2954, %v2994
      %v2996 = vpop.f32.mrb[0].mxu0
      %v2997 = vpop.f32.mrb[0].mxu0
      %v2998 = vadd.f32 %v2957, %v2997
      %v2999 = vpop.f32.mrb[0].mxu0
      %3000 = vdwg.mxu0
      %3001 = vmatprep.subr.bf16.mxu0 0
      %3002 = vmatpush1.bf16.msra.mxu0 %v2542
      %3003 = vmatprep.subr.bf16.mxu0 0
      %3004 = vmatpush1.bf16.msra.mxu0 %v2543
      %3005 = vmatprep.subr.bf16.mxu0 0
      %3006 = vmatpush1.bf16.msra.mxu0 %v2544
      %3007 = vmatprep.subr.bf16.mxu0 0
      %3008 = vmatpush1.bf16.msra.mxu0 %v2545
      %3009 = vmatprep.subr.bf16.mxu0 0
      %3010 = vmatpush1.bf16.msra.mxu0 %v2546
      %3011 = vmatprep.subr.bf16.mxu0 0
      %3012 = vmatpush1.bf16.msra.mxu0 %v2547
      %3013 = vmatprep.subr.bf16.mxu0 0
      %3014 = vmatpush1.bf16.msra.mxu0 %v2548
      %3015 = vmatprep.subr.bf16.mxu0 0
      %3016 = vmatpush1.bf16.msra.mxu0 %v2549
      %3017 = vmatprep.subr.bf16.mxu0 0
      %3018 = vmatpush1.bf16.msra.mxu0 %v2550
      %3019 = vmatprep.subr.bf16.mxu0 0
      %3020 = vmatpush1.bf16.msra.mxu0 %v2551
      %3021 = vmatprep.subr.bf16.mxu0 0
      %3022 = vmatpush1.bf16.msra.mxu0 %v2552
      %3023 = vmatprep.subr.bf16.mxu0 0
      %3024 = vmatpush1.bf16.msra.mxu0 %v2553
      %3025 = vmatprep.subr.bf16.mxu0 0
      %3026 = vmatpush1.bf16.msra.mxu0 %v2554
      %3027 = vmatprep.subr.bf16.mxu0 0
      %3028 = vmatpush1.bf16.msra.mxu0 %v2555
      %3029 = vmatprep.subr.bf16.mxu0 0
      %3030 = vmatpush1.bf16.msra.mxu0 %v2556
      %3031 = vmatprep.subr.bf16.mxu0 0
      %3032 = vmatpush1.bf16.msra.mxu0 %v2557
      %3033 = vmatprep.mubr.bf16.mxu0 %v1318
      %3034 = vmatmul.mubr.bf16.gmra.mrb[0].mxu0 %v1317
      %v3035 = vpop.f32.mrb[0].mxu0
      %v3036 = vadd.f32 %v2995, %v3035
      %v3037 = vpop.f32.mrb[0].mxu0
      %v3038 = vpop.f32.mrb[0].mxu0
      %v3039 = vadd.f32 %v2998, %v3038
      %v3040 = vpop.f32.mrb[0].mxu0
      %3041 = vdwg.mxu0
      %3042 = vmatprep.subr.bf16.mxu0 0
      %3043 = vmatpush1.bf16.msra.mxu0 %v2558
      %3044 = vmatprep.subr.bf16.mxu0 0
      %3045 = vmatpush1.bf16.msra.mxu0 %v2559
      %3046 = vmatprep.subr.bf16.mxu0 0
      %3047 = vmatpush1.bf16.msra.mxu0 %v2560
      %3048 = vmatprep.subr.bf16.mxu0 0
      %3049 = vmatpush1.bf16.msra.mxu0 %v2561
      %3050 = vmatprep.subr.bf16.mxu0 0
      %3051 = vmatpush1.bf16.msra.mxu0 %v2562
      %3052 = vmatprep.subr.bf16.mxu0 0
      %3053 = vmatpush1.bf16.msra.mxu0 %v2563
      %3054 = vmatprep.subr.bf16.mxu0 0
      %3055 = vmatpush1.bf16.msra.mxu0 %v2564
      %3056 = vmatprep.subr.bf16.mxu0 0
      %3057 = vmatpush1.bf16.msra.mxu0 %v2565
      %3058 = vmatprep.subr.bf16.mxu0 0
      %3059 = vmatpush1.bf16.msra.mxu0 %v2566
      %3060 = vmatprep.subr.bf16.mxu0 0
      %3061 = vmatpush1.bf16.msra.mxu0 %v2567
      %3062 = vmatprep.subr.bf16.mxu0 0
      %3063 = vmatpush1.bf16.msra.mxu0 %v2568
      %3064 = vmatprep.subr.bf16.mxu0 0
      %3065 = vmatpush1.bf16.msra.mxu0 %v2569
      %3066 = vmatprep.subr.bf16.mxu0 0
      %3067 = vmatpush1.bf16.msra.mxu0 %v2570
      %3068 = vmatprep.subr.bf16.mxu0 0
      %3069 = vmatpush1.bf16.msra.mxu0 %v2571
      %3070 = vmatprep.subr.bf16.mxu0 0
      %3071 = vmatpush1.bf16.msra.mxu0 %v2572
      %3072 = vmatprep.subr.bf16.mxu0 0
      %3073 = vmatpush1.bf16.msra.mxu0 %v2573
      %3074 = vmatprep.mubr.bf16.mxu0 %v1320
      %3075 = vmatmul.mubr.bf16.gmra.mrb[0].mxu0 %v1319
      %v3076 = vpop.f32.mrb[0].mxu0
      %v3077 = vadd.f32 %v3036, %v3076
      %v3078 = vpop.f32.mrb[0].mxu0
      %v3079 = vpop.f32.mrb[0].mxu0
      %v3080 = vadd.f32 %v3039, %v3079
      %v3081 = vpop.f32.mrb[0].mxu0
      %3082 = vdwg.mxu0
      %3083 = vmatprep.subr.bf16.mxu0 0
      %3084 = vmatpush1.bf16.msra.mxu0 %v2574
      %3085 = vmatprep.subr.bf16.mxu0 0
      %3086 = vmatpush1.bf16.msra.mxu0 %v2575
      %3087 = vmatprep.subr.bf16.mxu0 0
      %3088 = vmatpush1.bf16.msra.mxu0 %v2576
      %3089 = vmatprep.subr.bf16.mxu0 0
      %3090 = vmatpush1.bf16.msra.mxu0 %v2577
      %3091 = vmatprep.subr.bf16.mxu0 0
      %3092 = vmatpush1.bf16.msra.mxu0 %v2578
      %3093 = vmatprep.subr.bf16.mxu0 0
      %3094 = vmatpush1.bf16.msra.mxu0 %v2579
      %3095 = vmatprep.subr.bf16.mxu0 0
      %3096 = vmatpush1.bf16.msra.mxu0 %v2580
      %3097 = vmatprep.subr.bf16.mxu0 0
      %3098 = vmatpush1.bf16.msra.mxu0 %v2581
      %3099 = vmatprep.subr.bf16.mxu0 0
      %3100 = vmatpush1.bf16.msra.mxu0 %v2582
      %3101 = vmatprep.subr.bf16.mxu0 0
      %3102 = vmatpush1.bf16.msra.mxu0 %v2583
      %3103 = vmatprep.subr.bf16.mxu0 0
      %3104 = vmatpush1.bf16.msra.mxu0 %v2584
      %3105 = vmatprep.subr.bf16.mxu0 0
      %3106 = vmatpush1.bf16.msra.mxu0 %v2585
      %3107 = vmatprep.subr.bf16.mxu0 0
      %3108 = vmatpush1.bf16.msra.mxu0 %v2586
      %3109 = vmatprep.subr.bf16.mxu0 0
      %3110 = vmatpush1.bf16.msra.mxu0 %v2587
      %3111 = vmatprep.subr.bf16.mxu0 0
      %3112 = vmatpush1.bf16.msra.mxu0 %v2588
      %3113 = vmatprep.subr.bf16.mxu0 0
      %3114 = vmatpush1.bf16.msra.mxu0 %v2589
      %3115 = vmatprep.mubr.bf16.mxu0 %v1322
      %3116 = vmatmul.mubr.bf16.gmra.mrb[0].mxu0 %v1321
      %v3117 = vpop.f32.mrb[0].mxu0
      %v3118 = vadd.f32 %v3077, %v3117
      %v3119 = vpop.f32.mrb[0].mxu0
      %v3120 = vpop.f32.mrb[0].mxu0
      %v3121 = vadd.f32 %v3080, %v3120
      %v3122 = vpop.f32.mrb[0].mxu0
      %3123 = vdwg.mxu0
      %3124 = vmatprep.subr.bf16.mxu0 0
      %3125 = vmatpush1.bf16.msra.mxu0 %v2590
      %3126 = vmatprep.subr.bf16.mxu0 0
      %3127 = vmatpush1.bf16.msra.mxu0 %v2591
      %3128 = vmatprep.subr.bf16.mxu0 0
      %3129 = vmatpush1.bf16.msra.mxu0 %v2592
      %3130 = vmatprep.subr.bf16.mxu0 0
      %3131 = vmatpush1.bf16.msra.mxu0 %v2593
      %3132 = vmatprep.subr.bf16.mxu0 0
      %3133 = vmatpush1.bf16.msra.mxu0 %v2594
      %3134 = vmatprep.subr.bf16.mxu0 0
      %3135 = vmatpush1.bf16.msra.mxu0 %v2595
      %3136 = vmatprep.subr.bf16.mxu0 0
      %3137 = vmatpush1.bf16.msra.mxu0 %v2596
      %3138 = vmatprep.subr.bf16.mxu0 0
      %3139 = vmatpush1.bf16.msra.mxu0 %v2597
      %3140 = vmatprep.subr.bf16.mxu0 0
      %3141 = vmatpush1.bf16.msra.mxu0 %v2598
      %3142 = vmatprep.subr.bf16.mxu0 0
      %3143 = vmatpush1.bf16.msra.mxu0 %v2599
      %3144 = vmatprep.subr.bf16.mxu0 0
      %3145 = vmatpush1.bf16.msra.mxu0 %v2600
      %3146 = vmatprep.subr.bf16.mxu0 0
      %3147 = vmatpush1.bf16.msra.mxu0 %v2601
      %3148 = vmatprep.subr.bf16.mxu0 0
      %3149 = vmatpush1.bf16.msra.mxu0 %v2602
      %3150 = vmatprep.subr.bf16.mxu0 0
      %3151 = vmatpush1.bf16.msra.mxu0 %v2603
      %3152 = vmatprep.subr.bf16.mxu0 0
      %3153 = vmatpush1.bf16.msra.mxu0 %v2604
      %3154 = vmatprep.subr.bf16.mxu0 0
      %3155 = vmatpush1.bf16.msra.mxu0 %v2605
      %3156 = vmatprep.mubr.bf16.mxu0 %v1324
      %3157 = vmatmul.mubr.bf16.gmra.mrb[0].mxu0 %v1323
      %v3158 = vpop.f32.mrb[0].mxu0
      %v3159 = vadd.f32 %v3118, %v3158
      %v3160 = vpop.f32.mrb[0].mxu0
      %v3161 = vpop.f32.mrb[0].mxu0
      %v3162 = vadd.f32 %v3121, %v3161
      %v3163 = vpop.f32.mrb[0].mxu0
      %3164 = vdwg.mxu0
      %3165 = vmatprep.subr.bf16.mxu0 0
      %3166 = vmatpush1.bf16.msra.mxu0 %v2606
      %3167 = vmatprep.subr.bf16.mxu0 0
      %3168 = vmatpush1.bf16.msra.mxu0 %v2607
      %3169 = vmatprep.subr.bf16.mxu0 0
      %3170 = vmatpush1.bf16.msra.mxu0 %v2608
      %3171 = vmatprep.subr.bf16.mxu0 0
      %3172 = vmatpush1.bf16.msra.mxu0 %v2609
      %3173 = vmatprep.subr.bf16.mxu0 0
      %3174 = vmatpush1.bf16.msra.mxu0 %v2610
      %3175 = vmatprep.subr.bf16.mxu0 0
      %3176 = vmatpush1.bf16.msra.mxu0 %v2611
      %3177 = vmatprep.subr.bf16.mxu0 0
      %3178 = vmatpush1.bf16.msra.mxu0 %v2612
      %3179 = vmatprep.subr.bf16.mxu0 0
      %3180 = vmatpush1.bf16.msra.mxu0 %v2613
      %3181 = vmatprep.subr.bf16.mxu0 0
      %3182 = vmatpush1.bf16.msra.mxu0 %v2614
      %3183 = vmatprep.subr.bf16.mxu0 0
      %3184 = vmatpush1.bf16.msra.mxu0 %v2615
      %3185 = vmatprep.subr.bf16.mxu0 0
      %3186 = vmatpush1.bf16.msra.mxu0 %v2616
      %3187 = vmatprep.subr.bf16.mxu0 0
      %3188 = vmatpush1.bf16.msra.mxu0 %v2617
      %3189 = vmatprep.subr.bf16.mxu0 0
      %3190 = vmatpush1.bf16.msra.mxu0 %v2618
      %3191 = vmatprep.subr.bf16.mxu0 0
      %3192 = vmatpush1.bf16.msra.mxu0 %v2619
      %3193 = vmatprep.subr.bf16.mxu0 0
      %3194 = vmatpush1.bf16.msra.mxu0 %v2620
      %3195 = vmatprep.subr.bf16.mxu0 0
      %3196 = vmatpush1.bf16.msra.mxu0 %v2621
      %3197 = vmatprep.mubr.bf16.mxu0 %v1326
      %3198 = vmatmul.mubr.bf16.gmra.mrb[0].mxu0 %v1325
      %v3199 = vpop.f32.mrb[0].mxu0
      %v3200 = vadd.f32 %v3159, %v3199
      %v3201 = vpop.f32.mrb[0].mxu0
      %v3202 = vpop.f32.mrb[0].mxu0
      %v3203 = vadd.f32 %v3162, %v3202
      %v3204 = vpop.f32.mrb[0].mxu0
      %3205 = vdwg.mxu0
      %3206 = vmatprep.subr.bf16.mxu0 0
      %3207 = vmatpush1.bf16.msra.mxu0 %v2622
      %3208 = vmatprep.subr.bf16.mxu0 0
      %3209 = vmatpush1.bf16.msra.mxu0 %v2623
      %3210 = vmatprep.subr.bf16.mxu0 0
      %3211 = vmatpush1.bf16.msra.mxu0 %v2624
      %3212 = vmatprep.subr.bf16.mxu0 0
      %3213 = vmatpush1.bf16.msra.mxu0 %v2625
      %3214 = vmatprep.subr.bf16.mxu0 0
      %3215 = vmatpush1.bf16.msra.mxu0 %v2626
      %3216 = vmatprep.subr.bf16.mxu0 0
      %3217 = vmatpush1.bf16.msra.mxu0 %v2627
      %3218 = vmatprep.subr.bf16.mxu0 0
      %3219 = vmatpush1.bf16.msra.mxu0 %v2628
      %3220 = vmatprep.subr.bf16.mxu0 0
      %3221 = vmatpush1.bf16.msra.mxu0 %v2629
      %3222 = vmatprep.subr.bf16.mxu0 0
      %3223 = vmatpush1.bf16.msra.mxu0 %v2630
      %3224 = vmatprep.subr.bf16.mxu0 0
      %3225 = vmatpush1.bf16.msra.mxu0 %v2631
      %3226 = vmatprep.subr.bf16.mxu0 0
      %3227 = vmatpush1.bf16.msra.mxu0 %v2632
      %3228 = vmatprep.subr.bf16.mxu0 0
      %3229 = vmatpush1.bf16.msra.mxu0 %v2633
      %3230 = vmatprep.subr.bf16.mxu0 0
      %3231 = vmatpush1.bf16.msra.mxu0 %v2634
      %3232 = vmatprep.subr.bf16.mxu0 0
      %3233 = vmatpush1.bf16.msra.mxu0 %v2635
      %3234 = vmatprep.subr.bf16.mxu0 0
      %3235 = vmatpush1.bf16.msra.mxu0 %v2636
      %3236 = vmatprep.subr.bf16.mxu0 0
      %3237 = vmatpush1.bf16.msra.mxu0 %v2637
      %3238 = vmatprep.mubr.bf16.mxu0 %v1328
      %3239 = vmatmul.mubr.bf16.gmra.mrb[0].mxu0 %v1327
      %v3240 = vpop.f32.mrb[0].mxu0
      %v3241 = vadd.f32 %v3200, %v3240
      %v3242 = vpop.f32.mrb[0].mxu0
      %v3243 = vpop.f32.mrb[0].mxu0
      %v3244 = vadd.f32 %v3203, %v3243
      %v3245 = vpop.f32.mrb[0].mxu0
      %3246 = vdwg.mxu0
      %3247 = vmatprep.subr.bf16.mxu0 0
      %3248 = vmatpush1.bf16.msra.mxu0 %v2638
      %3249 = vmatprep.subr.bf16.mxu0 0
      %3250 = vmatpush1.bf16.msra.mxu0 %v2639
      %3251 = vmatprep.subr.bf16.mxu0 0
      %3252 = vmatpush1.bf16.msra.mxu0 %v2640
      %3253 = vmatprep.subr.bf16.mxu0 0
      %3254 = vmatpush1.bf16.msra.mxu0 %v2641
      %3255 = vmatprep.subr.bf16.mxu0 0
      %3256 = vmatpush1.bf16.msra.mxu0 %v2642
      %3257 = vmatprep.subr.bf16.mxu0 0
      %3258 = vmatpush1.bf16.msra.mxu0 %v2643
      %3259 = vmatprep.subr.bf16.mxu0 0
      %3260 = vmatpush1.bf16.msra.mxu0 %v2644
      %3261 = vmatprep.subr.bf16.mxu0 0
      %3262 = vmatpush1.bf16.msra.mxu0 %v2645
      %3263 = vmatprep.subr.bf16.mxu0 0
      %3264 = vmatpush1.bf16.msra.mxu0 %v2646
      %3265 = vmatprep.subr.bf16.mxu0 0
      %3266 = vmatpush1.bf16.msra.mxu0 %v2647
      %3267 = vmatprep.subr.bf16.mxu0 0
      %3268 = vmatpush1.bf16.msra.mxu0 %v2648
      %3269 = vmatprep.subr.bf16.mxu0 0
      %3270 = vmatpush1.bf16.msra.mxu0 %v2649
      %3271 = vmatprep.subr.bf16.mxu0 0
      %3272 = vmatpush1.bf16.msra.mxu0 %v2650
      %3273 = vmatprep.subr.bf16.mxu0 0
      %3274 = vmatpush1.bf16.msra.mxu0 %v2651
      %3275 = vmatprep.subr.bf16.mxu0 0
      %3276 = vmatpush1.bf16.msra.mxu0 %v2652
      %3277 = vmatprep.subr.bf16.mxu0 0
      %3278 = vmatpush1.bf16.msra.mxu0 %v2653
      %3279 = vmatprep.mubr.bf16.mxu0 %v1330
      %3280 = vmatmul.mubr.bf16.gmra.mrb[0].mxu0 %v1329
      %v3281 = vpop.f32.mrb[0].mxu0
      %v3282 = vadd.f32 %v3241, %v3281
      %v3283 = vpop.f32.mrb[0].mxu0
      %v3284 = vpop.f32.mrb[0].mxu0
      %v3285 = vadd.f32 %v3244, %v3284
      %v3286 = vpop.f32.mrb[0].mxu0
      %3287 = vdwg.mxu0
      %3288 = vmatprep.subr.bf16.mxu0 0
      %3289 = vmatpush1.bf16.msra.mxu0 %v2654
      %3290 = vmatprep.subr.bf16.mxu0 0
      %3291 = vmatpush1.bf16.msra.mxu0 %v2655
      %3292 = vmatprep.subr.bf16.mxu0 0
      %3293 = vmatpush1.bf16.msra.mxu0 %v2656
      %3294 = vmatprep.subr.bf16.mxu0 0
      %3295 = vmatpush1.bf16.msra.mxu0 %v2657
      %3296 = vmatprep.subr.bf16.mxu0 0
      %3297 = vmatpush1.bf16.msra.mxu0 %v2658
      %3298 = vmatprep.subr.bf16.mxu0 0
      %3299 = vmatpush1.bf16.msra.mxu0 %v2659
      %3300 = vmatprep.subr.bf16.mxu0 0
      %3301 = vmatpush1.bf16.msra.mxu0 %v2660
      %3302 = vmatprep.subr.bf16.mxu0 0
      %3303 = vmatpush1.bf16.msra.mxu0 %v2661
      %3304 = vmatprep.subr.bf16.mxu0 0
      %3305 = vmatpush1.bf16.msra.mxu0 %v2662
      %3306 = vmatprep.subr.bf16.mxu0 0
      %3307 = vmatpush1.bf16.msra.mxu0 %v2663
      %3308 = vmatprep.subr.bf16.mxu0 0
      %3309 = vmatpush1.bf16.msra.mxu0 %v2664
      %3310 = vmatprep.subr.bf16.mxu0 0
      %3311 = vmatpush1.bf16.msra.mxu0 %v2665
      %3312 = vmatprep.subr.bf16.mxu0 0
      %3313 = vmatpush1.bf16.msra.mxu0 %v2666
      %3314 = vmatprep.subr.bf16.mxu0 0
      %3315 = vmatpush1.bf16.msra.mxu0 %v2667
      %3316 = vmatprep.subr.bf16.mxu0 0
      %3317 = vmatpush1.bf16.msra.mxu0 %v2668
      %3318 = vmatprep.subr.bf16.mxu0 0
      %3319 = vmatpush1.bf16.msra.mxu0 %v2669
      %3320 = vmatprep.mubr.bf16.mxu0 %v1332
      %3321 = vmatmul.mubr.bf16.gmra.mrb[0].mxu0 %v1331
      %v3322 = vpop.f32.mrb[0].mxu0
      %v3323 = vadd.f32 %v3282, %v3322
      %v3324 = vpop.f32.mrb[0].mxu0
      %v3325 = vpop.f32.mrb[0].mxu0
      %v3326 = vadd.f32 %v3285, %v3325
      %v3327 = vpop.f32.mrb[0].mxu0
      %3328 = vdwg.mxu0
      %3329 = vmatprep.subr.bf16.mxu0 0
      %3330 = vmatpush1.bf16.msra.mxu0 %v2670
      %3331 = vmatprep.subr.bf16.mxu0 0
      %3332 = vmatpush1.bf16.msra.mxu0 %v2671
      %3333 = vmatprep.subr.bf16.mxu0 0
      %3334 = vmatpush1.bf16.msra.mxu0 %v2672
      %3335 = vmatprep.subr.bf16.mxu0 0
      %3336 = vmatpush1.bf16.msra.mxu0 %v2673
      %3337 = vmatprep.subr.bf16.mxu0 0
      %3338 = vmatpush1.bf16.msra.mxu0 %v2674
      %3339 = vmatprep.subr.bf16.mxu0 0
      %3340 = vmatpush1.bf16.msra.mxu0 %v2675
      %3341 = vmatprep.subr.bf16.mxu0 0
      %3342 = vmatpush1.bf16.msra.mxu0 %v2676
      %3343 = vmatprep.subr.bf16.mxu0 0
      %3344 = vmatpush1.bf16.msra.mxu0 %v2677
      %3345 = vmatprep.subr.bf16.mxu0 0
      %3346 = vmatpush1.bf16.msra.mxu0 %v2678
      %3347 = vmatprep.subr.bf16.mxu0 0
      %3348 = vmatpush1.bf16.msra.mxu0 %v2679
      %3349 = vmatprep.subr.bf16.mxu0 0
      %3350 = vmatpush1.bf16.msra.mxu0 %v2680
      %3351 = vmatprep.subr.bf16.mxu0 0
      %3352 = vmatpush1.bf16.msra.mxu0 %v2681
      %3353 = vmatprep.subr.bf16.mxu0 0
      %3354 = vmatpush1.bf16.msra.mxu0 %v2682
      %3355 = vmatprep.subr.bf16.mxu0 0
      %3356 = vmatpush1.bf16.msra.mxu0 %v2683
      %3357 = vmatprep.subr.bf16.mxu0 0
      %3358 = vmatpush1.bf16.msra.mxu0 %v2684
      %3359 = vmatprep.subr.bf16.mxu0 0
      %3360 = vmatpush1.bf16.msra.mxu0 %v2685
      %3361 = vmatprep.mubr.bf16.mxu0 %v1334
      %3362 = vmatmul.mubr.bf16.gmra.mrb[0].mxu0 %v1333
      %v3363 = vpop.f32.mrb[0].mxu0
      %v3364 = vadd.f32 %v3323, %v3363
      %v3365 = vpop.f32.mrb[0].mxu0
      %v3366 = vpop.f32.mrb[0].mxu0
      %v3367 = vadd.f32 %v3326, %v3366
      %v3368 = vpop.f32.mrb[0].mxu0
      %3369 = vdwg.mxu0
      %3370 = vst [vmem:[#allocation11] sm:$0xff] %v3364
      %3371 = vst [vmem:[#allocation11 + $0x8] sm:$0xff] %v3367
    $region49: #{mlp_forward.1} parent=1 // pred_fallthru
      _
    // Predicated region
    $region50: #{mlp_forward.1} parent=1 // pred_check
      _
    $region51: #{mlp_forward.1} parent=1 // pred_check_branch
      %3373 = sbr.rel (0) target = $region53
    $region52: #{mlp_forward.1} parent=1 // pred_region
      %s3375 = ssub.s32 256, 128
      %3376 = vsyncadd [#allocation5], %s3375
      %s3377 = sshll.u32 [#allocation11], 4
      %s3378 = int_to_ptr.vmem [resolvable:$true] %s3377
      %3383 = dma.vmem_to_hbm [thread:$0]  %s3378, 128, %s5, [#allocation5], 128, 128, 8
    $region53: #{mlp_forward.1} parent=1 // pred_fallthru
      _
    // Predicated region
    $region54: #{mlp_forward.1} parent=1 // pred_check
      _
    $region55: #{mlp_forward.1} parent=1 // pred_check_branch
      %3385 = sbr.rel (0) target = $region57
    $region56: #{mlp_forward.1} parent=1 // pred_region
      %3386 = dma.done [#allocation5], 256
    $region57: #{mlp_forward.1} parent=1 // pred_fallthru
      _
    %3387 = vsyncpa [#allocation4], 1
    %3388 = vsyncpa [#allocation7], 1
    %3389 = vsyncpa [#allocation10], 1
    %3390 = vsyncpa [#allocation5], 1

</llo_original>
